<compile_context>
chip_gen: v7x
topology: tpu7x:2x2x1
jax: 0.10.0
libtpu: 0.0.40
codegen_flags: <defaults>
</compile_context>

<pallas_src>
import functools
import math

import jax
import jax.numpy as jnp
from jax.experimental import pallas as pl
from jax.experimental.pallas import tpu as pltpu

# ---------------- synthetic config (stands in for `parameters` dict) ----------
PARAMS = dict(
    ImageSize=(16, 32),       # small analogue of (100, 500)
    PatchSize=(8, 8),
    in_channels=3,
    embedding_dim=32,
    num_heads=4,
    num_layers=2,
    dropout=0.0,              # dropout == identity
)
LN_EPS = 1e-5


# ------------------------------ fused Pallas kernel ---------------------------
def _vit_fused_kernel(
    patches_ref, pe_ref, pw_ref, pb_ref, hsel_ref, hexp_ref,
    wq_ref, bq_ref, wk_ref, bk_ref, wv_ref, bv_ref,
    wo_ref, bo_ref, g1_ref, be1_ref,
    wff1_ref, bff1_ref, wff2_ref, bff2_ref, g2_ref, be2_ref,
    o_ref, *, B, N, num_layers, eps):
    """Whole ViT forward on VMEM-resident data.

    patches: [B*N, C*ph*pw] (row = b*N + n), pe: [N, D], per-layer weights
    stacked on a leading L axis.  Output: [B*N, D] tokens.
    """
    hsel = hsel_ref[...]          # [D, heads]  (1 where lane d belongs to head h)
    hexp = hexp_ref[...]          # [heads, D]  (expands per-head scalar over Hd lanes)

    def layernorm(z, g, b):
        mu = jnp.mean(z, axis=-1, keepdims=True)
        var = jnp.mean((z - mu) ** 2, axis=-1, keepdims=True)   # biased, like PyTorch
        return (z - mu) * jax.lax.rsqrt(var + eps) * g + b

    # ---- patch embedding + positional encoding (pe replicated over B in vregs)
    pe_rows = jnp.concatenate([pe_ref[...]] * B, axis=0)          # [M, D]
    tok = (jnp.dot(patches_ref[...], pw_ref[...],
                   preferred_element_type=jnp.float32)
           + pb_ref[...] + pe_rows)                               # [M, D]

    def block(x, j):              # j-th N-row block along sublanes
        return x[j * N:(j + 1) * N, :]

    # ---- transformer encoder layers (L is static -> unrolled) ----
    for l in range(num_layers):
        # --- Q/K/V projections (1/sqrt(head_dim) pre-folded into wq/bq) ---
        q = jnp.dot(tok, wq_ref[l], preferred_element_type=jnp.float32) + bq_ref[l]
        k = jnp.dot(tok, wk_ref[l], preferred_element_type=jnp.float32) + bk_ref[l]
        v = jnp.dot(tok, wv_ref[l], preferred_element_type=jnp.float32) + bv_ref[l]

        # --- self-attention: seq axis = B, batch = N*heads (batch_first=False).
        # Stack every (b1, b2) pair along sublanes (block j = b1*B + b2) so the
        # per-head score reduction and head-expansion are ONE matmul each.
        qk = jnp.concatenate(
            [block(q, b1) * block(k, b2)
             for b1 in range(B) for b2 in range(B)], axis=0)       # [B*B*N, D]
        scores = jnp.dot(qk, hsel,
                         preferred_element_type=jnp.float32)       # [B*B*N, heads]

        # running max over b2 per (b1, n, head), then a single exp on the stack
        m_b1 = []
        for b1 in range(B):
            m = block(scores, b1 * B)
            for b2 in range(1, B):
                m = jnp.maximum(m, block(scores, b1 * B + b2))
            m_b1.append(m)
        m_full = jnp.concatenate(
            [m_b1[b1] for b1 in range(B) for _ in range(B)], axis=0)
        p = jnp.exp(scores - m_full)                               # one EUP push

        den_b1 = []
        for b1 in range(B):
            d = block(p, b1 * B)
            for b2 in range(1, B):
                d = d + block(p, b1 * B + b2)
            den_b1.append(d)
        den_full = jnp.concatenate(
            [den_b1[b1] for b1 in range(B) for _ in range(B)], axis=0)
        # approx=True uses the EUP vrcp slot; set approx=False for torch parity.
        pn = p * pl.reciprocal(den_full, approx=True)              # [B*B*N, heads]

        # head-expand once, weight v (block (b1,b2) needs v[b2] -> plain repeat),
        # reduce over b2 -- all in vregs, no VMEM scratch.
        wgt = jnp.dot(pn, hexp, preferred_element_type=jnp.float32)   # [B*B*N, D]
        prod = wgt * jnp.concatenate([v] * B, axis=0)                  # [B*B*N, D]
        out_b1 = []
        for b1 in range(B):
            acc = block(prod, b1 * B)
            for b2 in range(1, B):
                acc = acc + block(prod, b1 * B + b2)
            out_b1.append(acc)
        attn_out = jnp.concatenate(out_b1, axis=0)                 # [M, D]

        sa = (jnp.dot(attn_out, wo_ref[l],
                      preferred_element_type=jnp.float32) + bo_ref[l])
        tok = layernorm(tok + sa, g1_ref[l], be1_ref[l])           # post-norm

        # --- feed-forward (ReLU) ---
        h = jnp.maximum(
            jnp.dot(tok, wff1_ref[l], preferred_element_type=jnp.float32)
            + bff1_ref[l], 0.0)
        ff = (jnp.dot(h, wff2_ref[l], preferred_element_type=jnp.float32)
              + bff2_ref[l])
        tok = layernorm(tok + ff, g2_ref[l], be2_ref[l])

    o_ref[...] = tok


# ------------------------------ parameter setup --------------------------------
def make_pe(max_len, d_model):
    position = jnp.arange(max_len, dtype=jnp.float32)[:, None]
    div_term = jnp.exp(jnp.arange(0, d_model, 2, dtype=jnp.float32)
                       * (-math.log(10000.0) / d_model))
    pe = jnp.zeros((max_len, d_model), jnp.float32)
    pe = pe.at[:, 0::2].set(jnp.sin(position * div_term))
    pe = pe.at[:, 1::2].set(jnp.cos(position * div_term))
    return pe


def init_vit_params(key):
    D = PARAMS["embedding_dim"]
    C = PARAMS["in_channels"]
    ph, pw = PARAMS["PatchSize"]
    L = PARAMS["num_layers"]
    Hh, Ww = PARAMS["ImageSize"]
    N = (Hh // ph) * (Ww // pw)

    keys = list(jax.random.split(key, 4 + 4 * L))
    kit = iter(keys)

    def dense(k, shape, scale=0.02):
        return scale * jax.random.normal(k, shape, jnp.float32)

    params = {
        # Conv2d(in_channels, D, kernel=patch, stride=patch) as a dense matrix.
        "patch_img_w": dense(next(kit), (C * ph * pw, D)),
        "patch_img_b": dense(next(kit), (D,)),
        "patch_msk_w": dense(next(kit), (1 * ph * pw, D)),
        "patch_msk_b": dense(next(kit), (D,)),
        "pe": make_pe(N, D),
        "layers": [],
    }
    for _ in range(L):
        params["layers"].append({
            "w_qkv": dense(next(kit), (D, 3 * D)),
            "b_qkv": jnp.zeros((3 * D,), jnp.float32),
            "w_o":   dense(next(kit), (D, D)),
            "b_o":   jnp.zeros((D,), jnp.float32),
            "ln1_g": jnp.ones((D,), jnp.float32),
            "ln1_b": jnp.zeros((D,), jnp.float32),
            "w_ff1": dense(next(kit), (D, 4 * D)),
            "b_ff1": jnp.zeros((4 * D,), jnp.float32),
            "w_ff2": dense(next(kit), (4 * D, D)),
            "b_ff2": jnp.zeros((D,), jnp.float32),
            "ln2_g": jnp.ones((D,), jnp.float32),
            "ln2_b": jnp.zeros((D,), jnp.float32),
        })
    return params


# ------------------------------ forward pass ----------------------------------
def vit_forward(x, params):
    """x: NCHW float32 [B, C, H, W]  ->  [B, D, Nh, Nw] float32."""
    B, C, H, W = x.shape
    ph, pw = PARAMS["PatchSize"]
    Nh, Nw = H // ph, W // pw
    N = Nh * Nw
    D = PARAMS["embedding_dim"]
    heads = PARAMS["num_heads"]
    hd = D // heads
    L = PARAMS["num_layers"]
    M = B * N

    # ---- patchify (conv with stride==kernel == patchify + dense); XLA glue ----
    # TODO(synk): at the real 100x500 image size this transpose should become an
    #             in-kernel strided patch DMA overlapped with compute.
    patches = (x.reshape(B, C, Nh, ph, Nw, pw)
                 .transpose(0, 2, 4, 1, 3, 5)        # [B, Nh, Nw, C, ph, pw]
                 .reshape(M, C * ph * pw))
    if C == 3:
        w, b = params["patch_img_w"], params["patch_img_b"]
    elif C == 1:
        w, b = params["patch_msk_w"], params["patch_msk_b"]
    else:
        raise ValueError("Input channel must be 1 or 3!")

    # Head-selection / head-expansion constants (avoid per-head reshapes in-kernel).
    hsel = jnp.repeat(jnp.eye(heads, dtype=jnp.float32), hd, axis=0)   # [D, heads]
    hexp = hsel.T                                                      # [heads, D]

    # Stack per-layer weights along a leading L axis so the kernel indexes them.
    stk = lambda name: jnp.stack([lyr[name] for lyr in params["layers"]])
    scale = 1.0 / math.sqrt(hd)
    w_qkv = stk("w_qkv")                           # [L, D, 3D]
    b_qkv = stk("b_qkv")                           # [L, 3D]
    # Split packed in_proj into Q/K/V and fold the 1/sqrt(hd) scale into Q.
    w_q = w_qkv[:, :, 0:D] * scale
    w_k = w_qkv[:, :, D:2 * D]
    w_v = w_qkv[:, :, 2 * D:3 * D]
    b_q = (b_qkv[:, 0:D] * scale).reshape(L, 1, D)
    b_k = b_qkv[:, D:2 * D].reshape(L, 1, D)
    b_v = b_qkv[:, 2 * D:3 * D].reshape(L, 1, D)
    w_o   = stk("w_o")                             # [L, D, D]
    b_o   = stk("b_o").reshape(L, 1, D)
    g1    = stk("ln1_g").reshape(L, 1, D)
    be1   = stk("ln1_b").reshape(L, 1, D)
    w_ff1 = stk("w_ff1")                           # [L, D, 4D]
    b_ff1 = stk("b_ff1").reshape(L, 1, 4 * D)
    w_ff2 = stk("w_ff2")                           # [L, 4D, D]
    b_ff2 = stk("b_ff2").reshape(L, 1, D)
    g2    = stk("ln2_g").reshape(L, 1, D)
    be2   = stk("ln2_b").reshape(L, 1, D)

    kernel = functools.partial(
        _vit_fused_kernel, B=B, N=N, num_layers=L, eps=LN_EPS)

    tok = pl.pallas_call(
        kernel,
        out_shape=jax.ShapeDtypeStruct((M, D), jnp.float32),
        compiler_params=pltpu.CompilerParams(vmem_limit_bytes=32 * 1024 * 1024),
    )(patches, params["pe"][:N], w, b.reshape(1, D), hsel, hexp,
      w_q, b_q, w_k, b_k, w_v, b_v,
      w_o, b_o, g1, be1, w_ff1, b_ff1, w_ff2, b_ff2, g2, be2)

    # ---- final reshape/permute: [B*N, D] -> [B, Nh, Nw, D] -> [B, D, Nh, Nw]
    return tok.reshape(B, Nh, Nw, D).transpose(0, 3, 1, 2)


# ----------------------------------- main --------------------------------------
if __name__ == "__main__":
    key = jax.random.PRNGKey(0)
    pkey, xkey = jax.random.split(key)
    params = init_vit_params(pkey)

    B = 2
    C = PARAMS["in_channels"]
    H, W = PARAMS["ImageSize"]
    x = jax.random.normal(xkey, (B, C, H, W), jnp.float32)

    fwd = jax.jit(vit_forward)
    out = fwd(x, params)
    out = jax.block_until_ready(out)

    Nh = H // PARAMS["PatchSize"][0]
    Nw = W // PARAMS["PatchSize"][1]
    expected = (B, PARAMS["embedding_dim"], Nh, Nw)
    assert out.shape == expected, (out.shape, expected)
    assert out.dtype == jnp.float32
    assert bool(jnp.all(jnp.isfinite(out)))
    print("KERNEL_OK")
</pallas_src>

<mosaic_0001>
module attributes {stable_mosaic.version = 11 : i64} {
  func.func @_vit_fused_kernel(%arg0: memref<16x192xf32, #tpu.memory_space<vmem>>, %arg1: memref<8x32xf32, #tpu.memory_space<vmem>>, %arg2: memref<192x32xf32, #tpu.memory_space<vmem>>, %arg3: memref<1x32xf32, #tpu.memory_space<vmem>>, %arg4: memref<32x4xf32, #tpu.memory_space<vmem>>, %arg5: memref<4x32xf32, #tpu.memory_space<vmem>>, %arg6: memref<2x32x32xf32, #tpu.memory_space<vmem>>, %arg7: memref<2x1x32xf32, #tpu.memory_space<vmem>>, %arg8: memref<2x32x32xf32, #tpu.memory_space<vmem>>, %arg9: memref<2x1x32xf32, #tpu.memory_space<vmem>>, %arg10: memref<2x32x32xf32, #tpu.memory_space<vmem>>, %arg11: memref<2x1x32xf32, #tpu.memory_space<vmem>>, %arg12: memref<2x32x32xf32, #tpu.memory_space<vmem>>, %arg13: memref<2x1x32xf32, #tpu.memory_space<vmem>>, %arg14: memref<2x1x32xf32, #tpu.memory_space<vmem>>, %arg15: memref<2x1x32xf32, #tpu.memory_space<vmem>>, %arg16: memref<2x32x128xf32, #tpu.memory_space<vmem>>, %arg17: memref<2x1x128xf32, #tpu.memory_space<vmem>>, %arg18: memref<2x128x32xf32, #tpu.memory_space<vmem>>, %arg19: memref<2x1x32xf32, #tpu.memory_space<vmem>>, %arg20: memref<2x1x32xf32, #tpu.memory_space<vmem>>, %arg21: memref<2x1x32xf32, #tpu.memory_space<vmem>>, %arg22: memref<16x32xf32, #tpu.memory_space<vmem>>) attributes {dimension_semantics = [], scalar_prefetch = 0 : i64, scratch_operands = 0 : i64, tpu.core_type = #tpu.core_type<tc>} {
    %c0 = arith.constant 0 : index
    %c0_0 = arith.constant 0 : index
    %0 = vector.load %arg4[%c0, %c0_0] : memref<32x4xf32, #tpu.memory_space<vmem>>, vector<32x4xf32>
    %c0_1 = arith.constant 0 : index
    %c0_2 = arith.constant 0 : index
    %1 = vector.load %arg5[%c0_1, %c0_2] : memref<4x32xf32, #tpu.memory_space<vmem>>, vector<4x32xf32>
    %c0_3 = arith.constant 0 : index
    %c0_4 = arith.constant 0 : index
    %2 = vector.load %arg1[%c0_3, %c0_4] : memref<8x32xf32, #tpu.memory_space<vmem>>, vector<8x32xf32>
    %3 = tpu.concatenate %2, %2 in 0 : vector<8x32xf32>, vector<8x32xf32> -> vector<16x32xf32>
    %c0_5 = arith.constant 0 : index
    %c0_6 = arith.constant 0 : index
    %4 = vector.load %arg0[%c0_5, %c0_6] : memref<16x192xf32, #tpu.memory_space<vmem>>, vector<16x192xf32>
    %c0_7 = arith.constant 0 : index
    %c0_8 = arith.constant 0 : index
    %5 = vector.load %arg2[%c0_7, %c0_8] : memref<192x32xf32, #tpu.memory_space<vmem>>, vector<192x32xf32>
    %cst = arith.constant dense<0.000000e+00> : vector<16x32xf32>
    %6 = tpu.matmul %4, %5, %cst {dimension_numbers = #tpu.dot_dimension_numbers<[1], [0], [0], [1], [0, 0, 1, 1], [], []>} : vector<16x192xf32>, vector<192x32xf32>, vector<16x32xf32> -> vector<16x32xf32>
    %c0_9 = arith.constant 0 : index
    %c0_10 = arith.constant 0 : index
    %7 = vector.load %arg3[%c0_9, %c0_10] : memref<1x32xf32, #tpu.memory_space<vmem>>, vector<1x32xf32>
    %8 = vector.broadcast %7 : vector<1x32xf32> to vector<16x32xf32>
    %9 = arith.addf %6, %8 : vector<16x32xf32>
    %10 = arith.addf %9, %3 : vector<16x32xf32>
    %c0_11 = arith.constant 0 : index
    %c0_12 = arith.constant 0 : index
    %c0_13 = arith.constant 0 : index
    %11 = vector.load %arg6[%c0_11, %c0_12, %c0_13] : memref<2x32x32xf32, #tpu.memory_space<vmem>>, vector<1x32x32xf32>
    %12 = vector.shape_cast %11 : vector<1x32x32xf32> to vector<32x32xf32>
    %cst_14 = arith.constant dense<0.000000e+00> : vector<16x32xf32>
    %13 = tpu.matmul %10, %12, %cst_14 {dimension_numbers = #tpu.dot_dimension_numbers<[1], [0], [0], [1], [0, 0, 1, 1], [], []>} : vector<16x32xf32>, vector<32x32xf32>, vector<16x32xf32> -> vector<16x32xf32>
    %c0_15 = arith.constant 0 : index
    %c0_16 = arith.constant 0 : index
    %c0_17 = arith.constant 0 : index
    %14 = vector.load %arg7[%c0_15, %c0_16, %c0_17] : memref<2x1x32xf32, #tpu.memory_space<vmem>>, vector<1x1x32xf32>
    %15 = vector.shape_cast %14 : vector<1x1x32xf32> to vector<1x32xf32>
    %16 = vector.broadcast %15 : vector<1x32xf32> to vector<16x32xf32>
    %17 = arith.addf %13, %16 : vector<16x32xf32>
    %c0_18 = arith.constant 0 : index
    %c0_19 = arith.constant 0 : index
    %c0_20 = arith.constant 0 : index
    %18 = vector.load %arg8[%c0_18, %c0_19, %c0_20] : memref<2x32x32xf32, #tpu.memory_space<vmem>>, vector<1x32x32xf32>
    %19 = vector.shape_cast %18 : vector<1x32x32xf32> to vector<32x32xf32>
    %cst_21 = arith.constant dense<0.000000e+00> : vector<16x32xf32>
    %20 = tpu.matmul %10, %19, %cst_21 {dimension_numbers = #tpu.dot_dimension_numbers<[1], [0], [0], [1], [0, 0, 1, 1], [], []>} : vector<16x32xf32>, vector<32x32xf32>, vector<16x32xf32> -> vector<16x32xf32>
    %c0_22 = arith.constant 0 : index
    %c0_23 = arith.constant 0 : index
    %c0_24 = arith.constant 0 : index
    %21 = vector.load %arg9[%c0_22, %c0_23, %c0_24] : memref<2x1x32xf32, #tpu.memory_space<vmem>>, vector<1x1x32xf32>
    %22 = vector.shape_cast %21 : vector<1x1x32xf32> to vector<1x32xf32>
    %23 = vector.broadcast %22 : vector<1x32xf32> to vector<16x32xf32>
    %24 = arith.addf %20, %23 : vector<16x32xf32>
    %c0_25 = arith.constant 0 : index
    %c0_26 = arith.constant 0 : index
    %c0_27 = arith.constant 0 : index
    %25 = vector.load %arg10[%c0_25, %c0_26, %c0_27] : memref<2x32x32xf32, #tpu.memory_space<vmem>>, vector<1x32x32xf32>
    %26 = vector.shape_cast %25 : vector<1x32x32xf32> to vector<32x32xf32>
    %cst_28 = arith.constant dense<0.000000e+00> : vector<16x32xf32>
    %27 = tpu.matmul %10, %26, %cst_28 {dimension_numbers = #tpu.dot_dimension_numbers<[1], [0], [0], [1], [0, 0, 1, 1], [], []>} : vector<16x32xf32>, vector<32x32xf32>, vector<16x32xf32> -> vector<16x32xf32>
    %c0_29 = arith.constant 0 : index
    %c0_30 = arith.constant 0 : index
    %c0_31 = arith.constant 0 : index
    %28 = vector.load %arg11[%c0_29, %c0_30, %c0_31] : memref<2x1x32xf32, #tpu.memory_space<vmem>>, vector<1x1x32xf32>
    %29 = vector.shape_cast %28 : vector<1x1x32xf32> to vector<1x32xf32>
    %30 = vector.broadcast %29 : vector<1x32xf32> to vector<16x32xf32>
    %31 = arith.addf %27, %30 : vector<16x32xf32>
    %32 = vector.extract_strided_slice %17 {offsets = [0, 0], sizes = [8, 32], strides = [1, 1]} : vector<16x32xf32> to vector<8x32xf32>
    %33 = vector.extract_strided_slice %24 {offsets = [0, 0], sizes = [8, 32], strides = [1, 1]} : vector<16x32xf32> to vector<8x32xf32>
    %34 = arith.mulf %32, %33 : vector<8x32xf32>
    %35 = vector.extract_strided_slice %17 {offsets = [0, 0], sizes = [8, 32], strides = [1, 1]} : vector<16x32xf32> to vector<8x32xf32>
    %36 = vector.extract_strided_slice %24 {offsets = [8, 0], sizes = [8, 32], strides = [1, 1]} : vector<16x32xf32> to vector<8x32xf32>
    %37 = arith.mulf %35, %36 : vector<8x32xf32>
    %38 = vector.extract_strided_slice %17 {offsets = [8, 0], sizes = [8, 32], strides = [1, 1]} : vector<16x32xf32> to vector<8x32xf32>
    %39 = vector.extract_strided_slice %24 {offsets = [0, 0], sizes = [8, 32], strides = [1, 1]} : vector<16x32xf32> to vector<8x32xf32>
    %40 = arith.mulf %38, %39 : vector<8x32xf32>
    %41 = vector.extract_strided_slice %17 {offsets = [8, 0], sizes = [8, 32], strides = [1, 1]} : vector<16x32xf32> to vector<8x32xf32>
    %42 = vector.extract_strided_slice %24 {offsets = [8, 0], sizes = [8, 32], strides = [1, 1]} : vector<16x32xf32> to vector<8x32xf32>
    %43 = arith.mulf %41, %42 : vector<8x32xf32>
    %44 = tpu.concatenate %34, %37, %40, %43 in 0 : vector<8x32xf32>, vector<8x32xf32>, vector<8x32xf32>, vector<8x32xf32> -> vector<32x32xf32>
    %cst_32 = arith.constant dense<0.000000e+00> : vector<32x4xf32>
    %45 = tpu.matmul %44, %0, %cst_32 {dimension_numbers = #tpu.dot_dimension_numbers<[1], [0], [0], [1], [0, 0, 1, 1], [], []>} : vector<32x32xf32>, vector<32x4xf32>, vector<32x4xf32> -> vector<32x4xf32>
    %46 = vector.extract_strided_slice %45 {offsets = [0, 0], sizes = [8, 4], strides = [1, 1]} : vector<32x4xf32> to vector<8x4xf32>
    %47 = vector.extract_strided_slice %45 {offsets = [8, 0], sizes = [8, 4], strides = [1, 1]} : vector<32x4xf32> to vector<8x4xf32>
    %48 = arith.maximumf %46, %47 : vector<8x4xf32>
    %49 = vector.extract_strided_slice %45 {offsets = [16, 0], sizes = [8, 4], strides = [1, 1]} : vector<32x4xf32> to vector<8x4xf32>
    %50 = vector.extract_strided_slice %45 {offsets = [24, 0], sizes = [8, 4], strides = [1, 1]} : vector<32x4xf32> to vector<8x4xf32>
    %51 = arith.maximumf %49, %50 : vector<8x4xf32>
    %52 = tpu.concatenate %48, %48, %51, %51 in 0 : vector<8x4xf32>, vector<8x4xf32>, vector<8x4xf32>, vector<8x4xf32> -> vector<32x4xf32>
    %53 = arith.subf %45, %52 : vector<32x4xf32>
    %54 = math.exp %53 : vector<32x4xf32>
    %55 = vector.extract_strided_slice %54 {offsets = [0, 0], sizes = [8, 4], strides = [1, 1]} : vector<32x4xf32> to vector<8x4xf32>
    %56 = vector.extract_strided_slice %54 {offsets = [8, 0], sizes = [8, 4], strides = [1, 1]} : vector<32x4xf32> to vector<8x4xf32>
    %57 = arith.addf %55, %56 : vector<8x4xf32>
    %58 = vector.extract_strided_slice %54 {offsets = [16, 0], sizes = [8, 4], strides = [1, 1]} : vector<32x4xf32> to vector<8x4xf32>
    %59 = vector.extract_strided_slice %54 {offsets = [24, 0], sizes = [8, 4], strides = [1, 1]} : vector<32x4xf32> to vector<8x4xf32>
    %60 = arith.addf %58, %59 : vector<8x4xf32>
    %61 = tpu.concatenate %57, %57, %60, %60 in 0 : vector<8x4xf32>, vector<8x4xf32>, vector<8x4xf32>, vector<8x4xf32> -> vector<32x4xf32>
    %62 = tpu.reciprocal %61 {approx = true} : vector<32x4xf32> -> vector<32x4xf32>
    %63 = arith.mulf %54, %62 : vector<32x4xf32>
    %cst_33 = arith.constant dense<0.000000e+00> : vector<32x32xf32>
    %64 = tpu.matmul %63, %1, %cst_33 {dimension_numbers = #tpu.dot_dimension_numbers<[1], [0], [0], [1], [0, 0, 1, 1], [], []>} : vector<32x4xf32>, vector<4x32xf32>, vector<32x32xf32> -> vector<32x32xf32>
    %65 = tpu.concatenate %31, %31 in 0 : vector<16x32xf32>, vector<16x32xf32> -> vector<32x32xf32>
    %66 = arith.mulf %64, %65 : vector<32x32xf32>
    %67 = vector.extract_strided_slice %66 {offsets = [0, 0], sizes = [8, 32], strides = [1, 1]} : vector<32x32xf32> to vector<8x32xf32>
    %68 = vector.extract_strided_slice %66 {offsets = [8, 0], sizes = [8, 32], strides = [1, 1]} : vector<32x32xf32> to vector<8x32xf32>
    %69 = arith.addf %67, %68 : vector<8x32xf32>
    %70 = vector.extract_strided_slice %66 {offsets = [16, 0], sizes = [8, 32], strides = [1, 1]} : vector<32x32xf32> to vector<8x32xf32>
    %71 = vector.extract_strided_slice %66 {offsets = [24, 0], sizes = [8, 32], strides = [1, 1]} : vector<32x32xf32> to vector<8x32xf32>
    %72 = arith.addf %70, %71 : vector<8x32xf32>
    %73 = tpu.concatenate %69, %72 in 0 : vector<8x32xf32>, vector<8x32xf32> -> vector<16x32xf32>
    %c0_34 = arith.constant 0 : index
    %c0_35 = arith.constant 0 : index
    %c0_36 = arith.constant 0 : index
    %74 = vector.load %arg12[%c0_34, %c0_35, %c0_36] : memref<2x32x32xf32, #tpu.memory_space<vmem>>, vector<1x32x32xf32>
    %75 = vector.shape_cast %74 : vector<1x32x32xf32> to vector<32x32xf32>
    %cst_37 = arith.constant dense<0.000000e+00> : vector<16x32xf32>
    %76 = tpu.matmul %73, %75, %cst_37 {dimension_numbers = #tpu.dot_dimension_numbers<[1], [0], [0], [1], [0, 0, 1, 1], [], []>} : vector<16x32xf32>, vector<32x32xf32>, vector<16x32xf32> -> vector<16x32xf32>
    %c0_38 = arith.constant 0 : index
    %c0_39 = arith.constant 0 : index
    %c0_40 = arith.constant 0 : index
    %77 = vector.load %arg13[%c0_38, %c0_39, %c0_40] : memref<2x1x32xf32, #tpu.memory_space<vmem>>, vector<1x1x32xf32>
    %78 = vector.shape_cast %77 : vector<1x1x32xf32> to vector<1x32xf32>
    %79 = vector.broadcast %78 : vector<1x32xf32> to vector<16x32xf32>
    %80 = arith.addf %76, %79 : vector<16x32xf32>
    %81 = arith.addf %10, %80 : vector<16x32xf32>
    %c0_41 = arith.constant 0 : index
    %c0_42 = arith.constant 0 : index
    %c0_43 = arith.constant 0 : index
    %82 = vector.load %arg14[%c0_41, %c0_42, %c0_43] : memref<2x1x32xf32, #tpu.memory_space<vmem>>, vector<1x1x32xf32>
    %83 = vector.shape_cast %82 : vector<1x1x32xf32> to vector<1x32xf32>
    %c0_44 = arith.constant 0 : index
    %c0_45 = arith.constant 0 : index
    %c0_46 = arith.constant 0 : index
    %84 = vector.load %arg15[%c0_44, %c0_45, %c0_46] : memref<2x1x32xf32, #tpu.memory_space<vmem>>, vector<1x1x32xf32>
    %85 = vector.shape_cast %84 : vector<1x1x32xf32> to vector<1x32xf32>
    %cst_47 = arith.constant dense<0.000000e+00> : vector<16xf32>
    %86 = vector.multi_reduction <add>, %81, %cst_47 [1] : vector<16x32xf32> to vector<16xf32>
    %87 = vector.shape_cast %86 : vector<16xf32> to vector<16x1xf32>
    %cst_48 = arith.constant 3.200000e+01 : f32
    %88 = vector.broadcast %cst_48 : f32 to vector<16x1xf32>
    %89 = arith.divf %87, %88 : vector<16x1xf32>
    %90 = vector.broadcast %89 : vector<16x1xf32> to vector<16x32xf32>
    %91 = arith.subf %81, %90 : vector<16x32xf32>
    %92 = arith.mulf %91, %91 : vector<16x32xf32>
    %cst_49 = arith.constant dense<0.000000e+00> : vector<16xf32>
    %93 = vector.multi_reduction <add>, %92, %cst_49 [1] : vector<16x32xf32> to vector<16xf32>
    %94 = vector.shape_cast %93 : vector<16xf32> to vector<16x1xf32>
    %cst_50 = arith.constant 3.200000e+01 : f32
    %95 = vector.broadcast %cst_50 : f32 to vector<16x1xf32>
    %96 = arith.divf %94, %95 : vector<16x1xf32>
    %97 = vector.broadcast %89 : vector<16x1xf32> to vector<16x32xf32>
    %98 = arith.subf %81, %97 : vector<16x32xf32>
    %cst_51 = arith.constant 9.99999974E-6 : f32
    %99 = vector.broadcast %cst_51 : f32 to vector<16x1xf32>
    %100 = arith.addf %96, %99 : vector<16x1xf32>
    %101 = math.rsqrt %100 : vector<16x1xf32>
    %102 = vector.broadcast %101 : vector<16x1xf32> to vector<16x32xf32>
    %103 = arith.mulf %98, %102 : vector<16x32xf32>
    %104 = vector.broadcast %83 : vector<1x32xf32> to vector<16x32xf32>
    %105 = arith.mulf %103, %104 : vector<16x32xf32>
    %106 = vector.broadcast %85 : vector<1x32xf32> to vector<16x32xf32>
    %107 = arith.addf %105, %106 : vector<16x32xf32>
    %c0_52 = arith.constant 0 : index
    %c0_53 = arith.constant 0 : index
    %c0_54 = arith.constant 0 : index
    %108 = vector.load %arg16[%c0_52, %c0_53, %c0_54] : memref<2x32x128xf32, #tpu.memory_space<vmem>>, vector<1x32x128xf32>
    %109 = vector.shape_cast %108 : vector<1x32x128xf32> to vector<32x128xf32>
    %cst_55 = arith.constant dense<0.000000e+00> : vector<16x128xf32>
    %110 = tpu.matmul %107, %109, %cst_55 {dimension_numbers = #tpu.dot_dimension_numbers<[1], [0], [0], [1], [0, 0, 1, 1], [], []>} : vector<16x32xf32>, vector<32x128xf32>, vector<16x128xf32> -> vector<16x128xf32>
    %c0_56 = arith.constant 0 : index
    %c0_57 = arith.constant 0 : index
    %c0_58 = arith.constant 0 : index
    %111 = vector.load %arg17[%c0_56, %c0_57, %c0_58] : memref<2x1x128xf32, #tpu.memory_space<vmem>>, vector<1x1x128xf32>
    %112 = vector.shape_cast %111 : vector<1x1x128xf32> to vector<1x128xf32>
    %113 = vector.broadcast %112 : vector<1x128xf32> to vector<16x128xf32>
    %114 = arith.addf %110, %113 : vector<16x128xf32>
    %cst_59 = arith.constant 0.000000e+00 : f32
    %115 = vector.broadcast %cst_59 : f32 to vector<16x128xf32>
    %116 = arith.maximumf %114, %115 : vector<16x128xf32>
    %c0_60 = arith.constant 0 : index
    %c0_61 = arith.constant 0 : index
    %c0_62 = arith.constant 0 : index
    %117 = vector.load %arg18[%c0_60, %c0_61, %c0_62] : memref<2x128x32xf32, #tpu.memory_space<vmem>>, vector<1x128x32xf32>
    %118 = vector.shape_cast %117 : vector<1x128x32xf32> to vector<128x32xf32>
    %cst_63 = arith.constant dense<0.000000e+00> : vector<16x32xf32>
    %119 = tpu.matmul %116, %118, %cst_63 {dimension_numbers = #tpu.dot_dimension_numbers<[1], [0], [0], [1], [0, 0, 1, 1], [], []>} : vector<16x128xf32>, vector<128x32xf32>, vector<16x32xf32> -> vector<16x32xf32>
    %c0_64 = arith.constant 0 : index
    %c0_65 = arith.constant 0 : index
    %c0_66 = arith.constant 0 : index
    %120 = vector.load %arg19[%c0_64, %c0_65, %c0_66] : memref<2x1x32xf32, #tpu.memory_space<vmem>>, vector<1x1x32xf32>
    %121 = vector.shape_cast %120 : vector<1x1x32xf32> to vector<1x32xf32>
    %122 = vector.broadcast %121 : vector<1x32xf32> to vector<16x32xf32>
    %123 = arith.addf %119, %122 : vector<16x32xf32>
    %124 = arith.addf %107, %123 : vector<16x32xf32>
    %c0_67 = arith.constant 0 : index
    %c0_68 = arith.constant 0 : index
    %c0_69 = arith.constant 0 : index
    %125 = vector.load %arg20[%c0_67, %c0_68, %c0_69] : memref<2x1x32xf32, #tpu.memory_space<vmem>>, vector<1x1x32xf32>
    %126 = vector.shape_cast %125 : vector<1x1x32xf32> to vector<1x32xf32>
    %c0_70 = arith.constant 0 : index
    %c0_71 = arith.constant 0 : index
    %c0_72 = arith.constant 0 : index
    %127 = vector.load %arg21[%c0_70, %c0_71, %c0_72] : memref<2x1x32xf32, #tpu.memory_space<vmem>>, vector<1x1x32xf32>
    %128 = vector.shape_cast %127 : vector<1x1x32xf32> to vector<1x32xf32>
    %cst_73 = arith.constant dense<0.000000e+00> : vector<16xf32>
    %129 = vector.multi_reduction <add>, %124, %cst_73 [1] : vector<16x32xf32> to vector<16xf32>
    %130 = vector.shape_cast %129 : vector<16xf32> to vector<16x1xf32>
    %cst_74 = arith.constant 3.200000e+01 : f32
    %131 = vector.broadcast %cst_74 : f32 to vector<16x1xf32>
    %132 = arith.divf %130, %131 : vector<16x1xf32>
    %133 = vector.broadcast %132 : vector<16x1xf32> to vector<16x32xf32>
    %134 = arith.subf %124, %133 : vector<16x32xf32>
    %135 = arith.mulf %134, %134 : vector<16x32xf32>
    %cst_75 = arith.constant dense<0.000000e+00> : vector<16xf32>
    %136 = vector.multi_reduction <add>, %135, %cst_75 [1] : vector<16x32xf32> to vector<16xf32>
    %137 = vector.shape_cast %136 : vector<16xf32> to vector<16x1xf32>
    %cst_76 = arith.constant 3.200000e+01 : f32
    %138 = vector.broadcast %cst_76 : f32 to vector<16x1xf32>
    %139 = arith.divf %137, %138 : vector<16x1xf32>
    %140 = vector.broadcast %132 : vector<16x1xf32> to vector<16x32xf32>
    %141 = arith.subf %124, %140 : vector<16x32xf32>
    %cst_77 = arith.constant 9.99999974E-6 : f32
    %142 = vector.broadcast %cst_77 : f32 to vector<16x1xf32>
    %143 = arith.addf %139, %142 : vector<16x1xf32>
    %144 = math.rsqrt %143 : vector<16x1xf32>
    %145 = vector.broadcast %144 : vector<16x1xf32> to vector<16x32xf32>
    %146 = arith.mulf %141, %145 : vector<16x32xf32>
    %147 = vector.broadcast %126 : vector<1x32xf32> to vector<16x32xf32>
    %148 = arith.mulf %146, %147 : vector<16x32xf32>
    %149 = vector.broadcast %128 : vector<1x32xf32> to vector<16x32xf32>
    %150 = arith.addf %148, %149 : vector<16x32xf32>
    %c1 = arith.constant 1 : index
    %c0_78 = arith.constant 0 : index
    %c0_79 = arith.constant 0 : index
    %151 = vector.load %arg6[%c1, %c0_78, %c0_79] : memref<2x32x32xf32, #tpu.memory_space<vmem>>, vector<1x32x32xf32>
    %152 = vector.shape_cast %151 : vector<1x32x32xf32> to vector<32x32xf32>
    %cst_80 = arith.constant dense<0.000000e+00> : vector<16x32xf32>
    %153 = tpu.matmul %150, %152, %cst_80 {dimension_numbers = #tpu.dot_dimension_numbers<[1], [0], [0], [1], [0, 0, 1, 1], [], []>} : vector<16x32xf32>, vector<32x32xf32>, vector<16x32xf32> -> vector<16x32xf32>
    %c1_81 = arith.constant 1 : index
    %c0_82 = arith.constant 0 : index
    %c0_83 = arith.constant 0 : index
    %154 = vector.load %arg7[%c1_81, %c0_82, %c0_83] : memref<2x1x32xf32, #tpu.memory_space<vmem>>, vector<1x1x32xf32>
    %155 = vector.shape_cast %154 : vector<1x1x32xf32> to vector<1x32xf32>
    %156 = vector.broadcast %155 : vector<1x32xf32> to vector<16x32xf32>
    %157 = arith.addf %153, %156 : vector<16x32xf32>
    %c1_84 = arith.constant 1 : index
    %c0_85 = arith.constant 0 : index
    %c0_86 = arith.constant 0 : index
    %158 = vector.load %arg8[%c1_84, %c0_85, %c0_86] : memref<2x32x32xf32, #tpu.memory_space<vmem>>, vector<1x32x32xf32>
    %159 = vector.shape_cast %158 : vector<1x32x32xf32> to vector<32x32xf32>
    %cst_87 = arith.constant dense<0.000000e+00> : vector<16x32xf32>
    %160 = tpu.matmul %150, %159, %cst_87 {dimension_numbers = #tpu.dot_dimension_numbers<[1], [0], [0], [1], [0, 0, 1, 1], [], []>} : vector<16x32xf32>, vector<32x32xf32>, vector<16x32xf32> -> vector<16x32xf32>
    %c1_88 = arith.constant 1 : index
    %c0_89 = arith.constant 0 : index
    %c0_90 = arith.constant 0 : index
    %161 = vector.load %arg9[%c1_88, %c0_89, %c0_90] : memref<2x1x32xf32, #tpu.memory_space<vmem>>, vector<1x1x32xf32>
    %162 = vector.shape_cast %161 : vector<1x1x32xf32> to vector<1x32xf32>
    %163 = vector.broadcast %162 : vector<1x32xf32> to vector<16x32xf32>
    %164 = arith.addf %160, %163 : vector<16x32xf32>
    %c1_91 = arith.constant 1 : index
    %c0_92 = arith.constant 0 : index
    %c0_93 = arith.constant 0 : index
    %165 = vector.load %arg10[%c1_91, %c0_92, %c0_93] : memref<2x32x32xf32, #tpu.memory_space<vmem>>, vector<1x32x32xf32>
    %166 = vector.shape_cast %165 : vector<1x32x32xf32> to vector<32x32xf32>
    %cst_94 = arith.constant dense<0.000000e+00> : vector<16x32xf32>
    %167 = tpu.matmul %150, %166, %cst_94 {dimension_numbers = #tpu.dot_dimension_numbers<[1], [0], [0], [1], [0, 0, 1, 1], [], []>} : vector<16x32xf32>, vector<32x32xf32>, vector<16x32xf32> -> vector<16x32xf32>
    %c1_95 = arith.constant 1 : index
    %c0_96 = arith.constant 0 : index
    %c0_97 = arith.constant 0 : index
    %168 = vector.load %arg11[%c1_95, %c0_96, %c0_97] : memref<2x1x32xf32, #tpu.memory_space<vmem>>, vector<1x1x32xf32>
    %169 = vector.shape_cast %168 : vector<1x1x32xf32> to vector<1x32xf32>
    %170 = vector.broadcast %169 : vector<1x32xf32> to vector<16x32xf32>
    %171 = arith.addf %167, %170 : vector<16x32xf32>
    %172 = vector.extract_strided_slice %157 {offsets = [0, 0], sizes = [8, 32], strides = [1, 1]} : vector<16x32xf32> to vector<8x32xf32>
    %173 = vector.extract_strided_slice %164 {offsets = [0, 0], sizes = [8, 32], strides = [1, 1]} : vector<16x32xf32> to vector<8x32xf32>
    %174 = arith.mulf %172, %173 : vector<8x32xf32>
    %175 = vector.extract_strided_slice %157 {offsets = [0, 0], sizes = [8, 32], strides = [1, 1]} : vector<16x32xf32> to vector<8x32xf32>
    %176 = vector.extract_strided_slice %164 {offsets = [8, 0], sizes = [8, 32], strides = [1, 1]} : vector<16x32xf32> to vector<8x32xf32>
    %177 = arith.mulf %175, %176 : vector<8x32xf32>
    %178 = vector.extract_strided_slice %157 {offsets = [8, 0], sizes = [8, 32], strides = [1, 1]} : vector<16x32xf32> to vector<8x32xf32>
    %179 = vector.extract_strided_slice %164 {offsets = [0, 0], sizes = [8, 32], strides = [1, 1]} : vector<16x32xf32> to vector<8x32xf32>
    %180 = arith.mulf %178, %179 : vector<8x32xf32>
    %181 = vector.extract_strided_slice %157 {offsets = [8, 0], sizes = [8, 32], strides = [1, 1]} : vector<16x32xf32> to vector<8x32xf32>
    %182 = vector.extract_strided_slice %164 {offsets = [8, 0], sizes = [8, 32], strides = [1, 1]} : vector<16x32xf32> to vector<8x32xf32>
    %183 = arith.mulf %181, %182 : vector<8x32xf32>
    %184 = tpu.concatenate %174, %177, %180, %183 in 0 : vector<8x32xf32>, vector<8x32xf32>, vector<8x32xf32>, vector<8x32xf32> -> vector<32x32xf32>
    %cst_98 = arith.constant dense<0.000000e+00> : vector<32x4xf32>
    %185 = tpu.matmul %184, %0, %cst_98 {dimension_numbers = #tpu.dot_dimension_numbers<[1], [0], [0], [1], [0, 0, 1, 1], [], []>} : vector<32x32xf32>, vector<32x4xf32>, vector<32x4xf32> -> vector<32x4xf32>
    %186 = vector.extract_strided_slice %185 {offsets = [0, 0], sizes = [8, 4], strides = [1, 1]} : vector<32x4xf32> to vector<8x4xf32>
    %187 = vector.extract_strided_slice %185 {offsets = [8, 0], sizes = [8, 4], strides = [1, 1]} : vector<32x4xf32> to vector<8x4xf32>
    %188 = arith.maximumf %186, %187 : vector<8x4xf32>
    %189 = vector.extract_strided_slice %185 {offsets = [16, 0], sizes = [8, 4], strides = [1, 1]} : vector<32x4xf32> to vector<8x4xf32>
    %190 = vector.extract_strided_slice %185 {offsets = [24, 0], sizes = [8, 4], strides = [1, 1]} : vector<32x4xf32> to vector<8x4xf32>
    %191 = arith.maximumf %189, %190 : vector<8x4xf32>
    %192 = tpu.concatenate %188, %188, %191, %191 in 0 : vector<8x4xf32>, vector<8x4xf32>, vector<8x4xf32>, vector<8x4xf32> -> vector<32x4xf32>
    %193 = arith.subf %185, %192 : vector<32x4xf32>
    %194 = math.exp %193 : vector<32x4xf32>
    %195 = vector.extract_strided_slice %194 {offsets = [0, 0], sizes = [8, 4], strides = [1, 1]} : vector<32x4xf32> to vector<8x4xf32>
    %196 = vector.extract_strided_slice %194 {offsets = [8, 0], sizes = [8, 4], strides = [1, 1]} : vector<32x4xf32> to vector<8x4xf32>
    %197 = arith.addf %195, %196 : vector<8x4xf32>
    %198 = vector.extract_strided_slice %194 {offsets = [16, 0], sizes = [8, 4], strides = [1, 1]} : vector<32x4xf32> to vector<8x4xf32>
    %199 = vector.extract_strided_slice %194 {offsets = [24, 0], sizes = [8, 4], strides = [1, 1]} : vector<32x4xf32> to vector<8x4xf32>
    %200 = arith.addf %198, %199 : vector<8x4xf32>
    %201 = tpu.concatenate %197, %197, %200, %200 in 0 : vector<8x4xf32>, vector<8x4xf32>, vector<8x4xf32>, vector<8x4xf32> -> vector<32x4xf32>
    %202 = tpu.reciprocal %201 {approx = true} : vector<32x4xf32> -> vector<32x4xf32>
    %203 = arith.mulf %194, %202 : vector<32x4xf32>
    %cst_99 = arith.constant dense<0.000000e+00> : vector<32x32xf32>
    %204 = tpu.matmul %203, %1, %cst_99 {dimension_numbers = #tpu.dot_dimension_numbers<[1], [0], [0], [1], [0, 0, 1, 1], [], []>} : vector<32x4xf32>, vector<4x32xf32>, vector<32x32xf32> -> vector<32x32xf32>
    %205 = tpu.concatenate %171, %171 in 0 : vector<16x32xf32>, vector<16x32xf32> -> vector<32x32xf32>
    %206 = arith.mulf %204, %205 : vector<32x32xf32>
    %207 = vector.extract_strided_slice %206 {offsets = [0, 0], sizes = [8, 32], strides = [1, 1]} : vector<32x32xf32> to vector<8x32xf32>
    %208 = vector.extract_strided_slice %206 {offsets = [8, 0], sizes = [8, 32], strides = [1, 1]} : vector<32x32xf32> to vector<8x32xf32>
    %209 = arith.addf %207, %208 : vector<8x32xf32>
    %210 = vector.extract_strided_slice %206 {offsets = [16, 0], sizes = [8, 32], strides = [1, 1]} : vector<32x32xf32> to vector<8x32xf32>
    %211 = vector.extract_strided_slice %206 {offsets = [24, 0], sizes = [8, 32], strides = [1, 1]} : vector<32x32xf32> to vector<8x32xf32>
    %212 = arith.addf %210, %211 : vector<8x32xf32>
    %213 = tpu.concatenate %209, %212 in 0 : vector<8x32xf32>, vector<8x32xf32> -> vector<16x32xf32>
    %c1_100 = arith.constant 1 : index
    %c0_101 = arith.constant 0 : index
    %c0_102 = arith.constant 0 : index
    %214 = vector.load %arg12[%c1_100, %c0_101, %c0_102] : memref<2x32x32xf32, #tpu.memory_space<vmem>>, vector<1x32x32xf32>
    %215 = vector.shape_cast %214 : vector<1x32x32xf32> to vector<32x32xf32>
    %cst_103 = arith.constant dense<0.000000e+00> : vector<16x32xf32>
    %216 = tpu.matmul %213, %215, %cst_103 {dimension_numbers = #tpu.dot_dimension_numbers<[1], [0], [0], [1], [0, 0, 1, 1], [], []>} : vector<16x32xf32>, vector<32x32xf32>, vector<16x32xf32> -> vector<16x32xf32>
    %c1_104 = arith.constant 1 : index
    %c0_105 = arith.constant 0 : index
    %c0_106 = arith.constant 0 : index
    %217 = vector.load %arg13[%c1_104, %c0_105, %c0_106] : memref<2x1x32xf32, #tpu.memory_space<vmem>>, vector<1x1x32xf32>
    %218 = vector.shape_cast %217 : vector<1x1x32xf32> to vector<1x32xf32>
    %219 = vector.broadcast %218 : vector<1x32xf32> to vector<16x32xf32>
    %220 = arith.addf %216, %219 : vector<16x32xf32>
    %221 = arith.addf %150, %220 : vector<16x32xf32>
    %c1_107 = arith.constant 1 : index
    %c0_108 = arith.constant 0 : index
    %c0_109 = arith.constant 0 : index
    %222 = vector.load %arg14[%c1_107, %c0_108, %c0_109] : memref<2x1x32xf32, #tpu.memory_space<vmem>>, vector<1x1x32xf32>
    %223 = vector.shape_cast %222 : vector<1x1x32xf32> to vector<1x32xf32>
    %c1_110 = arith.constant 1 : index
    %c0_111 = arith.constant 0 : index
    %c0_112 = arith.constant 0 : index
    %224 = vector.load %arg15[%c1_110, %c0_111, %c0_112] : memref<2x1x32xf32, #tpu.memory_space<vmem>>, vector<1x1x32xf32>
    %225 = vector.shape_cast %224 : vector<1x1x32xf32> to vector<1x32xf32>
    %cst_113 = arith.constant dense<0.000000e+00> : vector<16xf32>
    %226 = vector.multi_reduction <add>, %221, %cst_113 [1] : vector<16x32xf32> to vector<16xf32>
    %227 = vector.shape_cast %226 : vector<16xf32> to vector<16x1xf32>
    %cst_114 = arith.constant 3.200000e+01 : f32
    %228 = vector.broadcast %cst_114 : f32 to vector<16x1xf32>
    %229 = arith.divf %227, %228 : vector<16x1xf32>
    %230 = vector.broadcast %229 : vector<16x1xf32> to vector<16x32xf32>
    %231 = arith.subf %221, %230 : vector<16x32xf32>
    %232 = arith.mulf %231, %231 : vector<16x32xf32>
    %cst_115 = arith.constant dense<0.000000e+00> : vector<16xf32>
    %233 = vector.multi_reduction <add>, %232, %cst_115 [1] : vector<16x32xf32> to vector<16xf32>
    %234 = vector.shape_cast %233 : vector<16xf32> to vector<16x1xf32>
    %cst_116 = arith.constant 3.200000e+01 : f32
    %235 = vector.broadcast %cst_116 : f32 to vector<16x1xf32>
    %236 = arith.divf %234, %235 : vector<16x1xf32>
    %237 = vector.broadcast %229 : vector<16x1xf32> to vector<16x32xf32>
    %238 = arith.subf %221, %237 : vector<16x32xf32>
    %cst_117 = arith.constant 9.99999974E-6 : f32
    %239 = vector.broadcast %cst_117 : f32 to vector<16x1xf32>
    %240 = arith.addf %236, %239 : vector<16x1xf32>
    %241 = math.rsqrt %240 : vector<16x1xf32>
    %242 = vector.broadcast %241 : vector<16x1xf32> to vector<16x32xf32>
    %243 = arith.mulf %238, %242 : vector<16x32xf32>
    %244 = vector.broadcast %223 : vector<1x32xf32> to vector<16x32xf32>
    %245 = arith.mulf %243, %244 : vector<16x32xf32>
    %246 = vector.broadcast %225 : vector<1x32xf32> to vector<16x32xf32>
    %247 = arith.addf %245, %246 : vector<16x32xf32>
    %c1_118 = arith.constant 1 : index
    %c0_119 = arith.constant 0 : index
    %c0_120 = arith.constant 0 : index
    %248 = vector.load %arg16[%c1_118, %c0_119, %c0_120] : memref<2x32x128xf32, #tpu.memory_space<vmem>>, vector<1x32x128xf32>
    %249 = vector.shape_cast %248 : vector<1x32x128xf32> to vector<32x128xf32>
    %cst_121 = arith.constant dense<0.000000e+00> : vector<16x128xf32>
    %250 = tpu.matmul %247, %249, %cst_121 {dimension_numbers = #tpu.dot_dimension_numbers<[1], [0], [0], [1], [0, 0, 1, 1], [], []>} : vector<16x32xf32>, vector<32x128xf32>, vector<16x128xf32> -> vector<16x128xf32>
    %c1_122 = arith.constant 1 : index
    %c0_123 = arith.constant 0 : index
    %c0_124 = arith.constant 0 : index
    %251 = vector.load %arg17[%c1_122, %c0_123, %c0_124] : memref<2x1x128xf32, #tpu.memory_space<vmem>>, vector<1x1x128xf32>
    %252 = vector.shape_cast %251 : vector<1x1x128xf32> to vector<1x128xf32>
    %253 = vector.broadcast %252 : vector<1x128xf32> to vector<16x128xf32>
    %254 = arith.addf %250, %253 : vector<16x128xf32>
    %cst_125 = arith.constant 0.000000e+00 : f32
    %255 = vector.broadcast %cst_125 : f32 to vector<16x128xf32>
    %256 = arith.maximumf %254, %255 : vector<16x128xf32>
    %c1_126 = arith.constant 1 : index
    %c0_127 = arith.constant 0 : index
    %c0_128 = arith.constant 0 : index
    %257 = vector.load %arg18[%c1_126, %c0_127, %c0_128] : memref<2x128x32xf32, #tpu.memory_space<vmem>>, vector<1x128x32xf32>
    %258 = vector.shape_cast %257 : vector<1x128x32xf32> to vector<128x32xf32>
    %cst_129 = arith.constant dense<0.000000e+00> : vector<16x32xf32>
    %259 = tpu.matmul %256, %258, %cst_129 {dimension_numbers = #tpu.dot_dimension_numbers<[1], [0], [0], [1], [0, 0, 1, 1], [], []>} : vector<16x128xf32>, vector<128x32xf32>, vector<16x32xf32> -> vector<16x32xf32>
    %c1_130 = arith.constant 1 : index
    %c0_131 = arith.constant 0 : index
    %c0_132 = arith.constant 0 : index
    %260 = vector.load %arg19[%c1_130, %c0_131, %c0_132] : memref<2x1x32xf32, #tpu.memory_space<vmem>>, vector<1x1x32xf32>
    %261 = vector.shape_cast %260 : vector<1x1x32xf32> to vector<1x32xf32>
    %262 = vector.broadcast %261 : vector<1x32xf32> to vector<16x32xf32>
    %263 = arith.addf %259, %262 : vector<16x32xf32>
    %264 = arith.addf %247, %263 : vector<16x32xf32>
    %c1_133 = arith.constant 1 : index
    %c0_134 = arith.constant 0 : index
    %c0_135 = arith.constant 0 : index
    %265 = vector.load %arg20[%c1_133, %c0_134, %c0_135] : memref<2x1x32xf32, #tpu.memory_space<vmem>>, vector<1x1x32xf32>
    %266 = vector.shape_cast %265 : vector<1x1x32xf32> to vector<1x32xf32>
    %c1_136 = arith.constant 1 : index
    %c0_137 = arith.constant 0 : index
    %c0_138 = arith.constant 0 : index
    %267 = vector.load %arg21[%c1_136, %c0_137, %c0_138] : memref<2x1x32xf32, #tpu.memory_space<vmem>>, vector<1x1x32xf32>
    %268 = vector.shape_cast %267 : vector<1x1x32xf32> to vector<1x32xf32>
    %cst_139 = arith.constant dense<0.000000e+00> : vector<16xf32>
    %269 = vector.multi_reduction <add>, %264, %cst_139 [1] : vector<16x32xf32> to vector<16xf32>
    %270 = vector.shape_cast %269 : vector<16xf32> to vector<16x1xf32>
    %cst_140 = arith.constant 3.200000e+01 : f32
    %271 = vector.broadcast %cst_140 : f32 to vector<16x1xf32>
    %272 = arith.divf %270, %271 : vector<16x1xf32>
    %273 = vector.broadcast %272 : vector<16x1xf32> to vector<16x32xf32>
    %274 = arith.subf %264, %273 : vector<16x32xf32>
    %275 = arith.mulf %274, %274 : vector<16x32xf32>
    %cst_141 = arith.constant dense<0.000000e+00> : vector<16xf32>
    %276 = vector.multi_reduction <add>, %275, %cst_141 [1] : vector<16x32xf32> to vector<16xf32>
    %277 = vector.shape_cast %276 : vector<16xf32> to vector<16x1xf32>
    %cst_142 = arith.constant 3.200000e+01 : f32
    %278 = vector.broadcast %cst_142 : f32 to vector<16x1xf32>
    %279 = arith.divf %277, %278 : vector<16x1xf32>
    %280 = vector.broadcast %272 : vector<16x1xf32> to vector<16x32xf32>
    %281 = arith.subf %264, %280 : vector<16x32xf32>
    %cst_143 = arith.constant 9.99999974E-6 : f32
    %282 = vector.broadcast %cst_143 : f32 to vector<16x1xf32>
    %283 = arith.addf %279, %282 : vector<16x1xf32>
    %284 = math.rsqrt %283 : vector<16x1xf32>
    %285 = vector.broadcast %284 : vector<16x1xf32> to vector<16x32xf32>
    %286 = arith.mulf %281, %285 : vector<16x32xf32>
    %287 = vector.broadcast %266 : vector<1x32xf32> to vector<16x32xf32>
    %288 = arith.mulf %286, %287 : vector<16x32xf32>
    %289 = vector.broadcast %268 : vector<1x32xf32> to vector<16x32xf32>
    %290 = arith.addf %288, %289 : vector<16x32xf32>
    %c0_144 = arith.constant 0 : index
    %c0_145 = arith.constant 0 : index
    %291 = vector.load %arg22[%c0_144, %c0_145] : memref<16x32xf32, #tpu.memory_space<vmem>>, vector<16x32xf32>
    tpu.vector_store %arg22[%c0_144, %c0_145], %290 {strides = array<i32>} : memref<16x32xf32, #tpu.memory_space<vmem>>, vector<16x32xf32>,
    return
  }
}

</mosaic_0001>

<llo_original>
// kernel: vit_forward.1
$region0: #{vit_forward.1}
  #allocation0 [shape = 'u32[]', space=smem, size = 0x4, offset = 0x4, fixed_abs, tag = 'smem constant byte address 0x4 - core index']
  #allocation1 [shape = 'u32[144,128]{1,0:T(1,128)}', space=vmem, size = 0x12000, scoped, tag = 'internal scratch']
  %s0 = inlined_call_operand.vmem [shape: f32[16,192], index: 0, kind: input, shape index: {}]
  %s1 = inlined_call_operand.vmem [shape: f32[8,32], index: 1, kind: input, shape index: {}]
  %s2 = inlined_call_operand.vmem [shape: f32[192,32], index: 2, kind: input, shape index: {}]
  %s3 = inlined_call_operand.vmem [shape: f32[1,32], index: 3, kind: input, shape index: {}]
  %s4 = inlined_call_operand.vmem [shape: f32[32,4], index: 4, kind: input, shape index: {}]
  %s5 = inlined_call_operand.vmem [shape: f32[4,32], index: 5, kind: input, shape index: {}]
  %s6 = inlined_call_operand.vmem [shape: f32[2,32,32], index: 6, kind: input, shape index: {}]
  %s7 = inlined_call_operand.vmem [shape: f32[2,1,32], index: 7, kind: input, shape index: {}]
  %s8 = inlined_call_operand.vmem [shape: f32[2,32,32], index: 8, kind: input, shape index: {}]
  %s9 = inlined_call_operand.vmem [shape: f32[2,1,32], index: 9, kind: input, shape index: {}]
  %s10 = inlined_call_operand.vmem [shape: f32[2,32,32], index: 10, kind: input, shape index: {}]
  %s11 = inlined_call_operand.vmem [shape: f32[2,1,32], index: 11, kind: input, shape index: {}]
  %s12 = inlined_call_operand.vmem [shape: f32[2,32,32], index: 12, kind: input, shape index: {}]
  %s13 = inlined_call_operand.vmem [shape: f32[2,1,32], index: 13, kind: input, shape index: {}]
  %s14 = inlined_call_operand.vmem [shape: f32[2,1,32], index: 14, kind: input, shape index: {}]
  %s15 = inlined_call_operand.vmem [shape: f32[2,1,32], index: 15, kind: input, shape index: {}]
  %s16 = inlined_call_operand.vmem [shape: f32[2,32,128], index: 16, kind: input, shape index: {}]
  %s17 = inlined_call_operand.vmem [shape: f32[2,1,128], index: 17, kind: input, shape index: {}]
  %s18 = inlined_call_operand.vmem [shape: f32[2,128,32], index: 18, kind: input, shape index: {}]
  %s19 = inlined_call_operand.vmem [shape: f32[2,1,32], index: 19, kind: input, shape index: {}]
  %s20 = inlined_call_operand.vmem [shape: f32[2,1,32], index: 20, kind: input, shape index: {}]
  %s21 = inlined_call_operand.vmem [shape: f32[2,1,32], index: 21, kind: input, shape index: {}]
  %s22 = inlined_call_operand.hbm [shape: f32[16,32], index: 22, kind: output, shape index: {}]
  %s23 = sld [smem:[#allocation0]]
  $region98: #{vit_forward.1} parent=0
    _
  %s25 = ssub.s32 1, %s23
  %s26 = scalar_select 0, %s25, %s23
  $region1: #{vit_forward.1} parent=0
    #allocation2 [shape = 'u8[8192]{0}', space=vmem, size = 0x2000, scoped, tag = 'output window, operand 0, single buffered']
    #allocation3 [shape = 's32[1]{0}', space=sflag, size = 0x4, scoped, tag = 'scoped memory for vit_forward.1']
    %27 = vsyncpa [#allocation3], 0
    // Predicated region
    $region2: #{vit_forward.1} parent=1 // pred_check
      _
    $region3: #{vit_forward.1} parent=1 // pred_check_branch
      %29 = sbr.rel (0) target = $region5
    $region4: #{vit_forward.1} parent=1 // pred_region
      _
    $region5: #{vit_forward.1} parent=1 // pred_fallthru
      _
    // Predicated region
    $region6: #{vit_forward.1} parent=1 // pred_check
      _
    $region7: #{vit_forward.1} parent=1 // pred_check_branch
      %31 = sbr.rel (0) target = $region9
    $region8: #{vit_forward.1} parent=1 // pred_region
      _
    $region9: #{vit_forward.1} parent=1 // pred_fallthru
      _
    // Predicated region
    $region10: #{vit_forward.1} parent=1 // pred_check
      _
    $region11: #{vit_forward.1} parent=1 // pred_check_branch
      %33 = sbr.rel (0) target = $region13
    $region12: #{vit_forward.1} parent=1 // pred_region
      _
    $region13: #{vit_forward.1} parent=1 // pred_fallthru
      _
    // Predicated region
    $region14: #{vit_forward.1} parent=1 // pred_check
      _
    $region15: #{vit_forward.1} parent=1 // pred_check_branch
      %35 = sbr.rel (0) target = $region17
    $region16: #{vit_forward.1} parent=1 // pred_region
      _
    $region17: #{vit_forward.1} parent=1 // pred_fallthru
      _
    // Predicated region
    $region18: #{vit_forward.1} parent=1 // pred_check
      _
    $region19: #{vit_forward.1} parent=1 // pred_check_branch
      %37 = sbr.rel (0) target = $region21
    $region20: #{vit_forward.1} parent=1 // pred_region
      _
    $region21: #{vit_forward.1} parent=1 // pred_fallthru
      _
    // Predicated region
    $region22: #{vit_forward.1} parent=1 // pred_check
      _
    $region23: #{vit_forward.1} parent=1 // pred_check_branch
      %39 = sbr.rel (0) target = $region25
    $region24: #{vit_forward.1} parent=1 // pred_region
      _
    $region25: #{vit_forward.1} parent=1 // pred_fallthru
      _
    // Predicated region
    $region26: #{vit_forward.1} parent=1 // pred_check
      _
    $region27: #{vit_forward.1} parent=1 // pred_check_branch
      %41 = sbr.rel (0) target = $region29
    $region28: #{vit_forward.1} parent=1 // pred_region
      _
    $region29: #{vit_forward.1} parent=1 // pred_fallthru
      _
    // Predicated region
    $region30: #{vit_forward.1} parent=1 // pred_check
      _
    $region31: #{vit_forward.1} parent=1 // pred_check_branch
      %43 = sbr.rel (0) target = $region33
    $region32: #{vit_forward.1} parent=1 // pred_region
      _
    $region33: #{vit_forward.1} parent=1 // pred_fallthru
      _
    // Predicated region
    $region34: #{vit_forward.1} parent=1 // pred_check
      _
    $region35: #{vit_forward.1} parent=1 // pred_check_branch
      %45 = sbr.rel (0) target = $region37
    $region36: #{vit_forward.1} parent=1 // pred_region
      _
    $region37: #{vit_forward.1} parent=1 // pred_fallthru
      _
    // Predicated region
    $region38: #{vit_forward.1} parent=1 // pred_check
      _
    $region39: #{vit_forward.1} parent=1 // pred_check_branch
      %47 = sbr.rel (0) target = $region41
    $region40: #{vit_forward.1} parent=1 // pred_region
      _
    $region41: #{vit_forward.1} parent=1 // pred_fallthru
      _
    // Predicated region
    $region42: #{vit_forward.1} parent=1 // pred_check
      _
    $region43: #{vit_forward.1} parent=1 // pred_check_branch
      %49 = sbr.rel (0) target = $region45
    $region44: #{vit_forward.1} parent=1 // pred_region
      _
    $region45: #{vit_forward.1} parent=1 // pred_fallthru
      _
    // Predicated region
    $region46: #{vit_forward.1} parent=1 // pred_check
      _
    $region47: #{vit_forward.1} parent=1 // pred_check_branch
      %51 = sbr.rel (0) target = $region49
    $region48: #{vit_forward.1} parent=1 // pred_region
      _
    $region49: #{vit_forward.1} parent=1 // pred_fallthru
      _
    // Predicated region
    $region50: #{vit_forward.1} parent=1 // pred_check
      _
    $region51: #{vit_forward.1} parent=1 // pred_check_branch
      %53 = sbr.rel (0) target = $region53
    $region52: #{vit_forward.1} parent=1 // pred_region
      _
    $region53: #{vit_forward.1} parent=1 // pred_fallthru
      _
    // Predicated region
    $region54: #{vit_forward.1} parent=1 // pred_check
      _
    $region55: #{vit_forward.1} parent=1 // pred_check_branch
      %55 = sbr.rel (0) target = $region57
    $region56: #{vit_forward.1} parent=1 // pred_region
      _
    $region57: #{vit_forward.1} parent=1 // pred_fallthru
      _
    // Predicated region
    $region58: #{vit_forward.1} parent=1 // pred_check
      _
    $region59: #{vit_forward.1} parent=1 // pred_check_branch
      %57 = sbr.rel (0) target = $region61
    $region60: #{vit_forward.1} parent=1 // pred_region
      _
    $region61: #{vit_forward.1} parent=1 // pred_fallthru
      _
    // Predicated region
    $region62: #{vit_forward.1} parent=1 // pred_check
      _
    $region63: #{vit_forward.1} parent=1 // pred_check_branch
      %59 = sbr.rel (0) target = $region65
    $region64: #{vit_forward.1} parent=1 // pred_region
      _
    $region65: #{vit_forward.1} parent=1 // pred_fallthru
      _
    // Predicated region
    $region66: #{vit_forward.1} parent=1 // pred_check
      _
    $region67: #{vit_forward.1} parent=1 // pred_check_branch
      %61 = sbr.rel (0) target = $region69
    $region68: #{vit_forward.1} parent=1 // pred_region
      _
    $region69: #{vit_forward.1} parent=1 // pred_fallthru
      _
    // Predicated region
    $region70: #{vit_forward.1} parent=1 // pred_check
      _
    $region71: #{vit_forward.1} parent=1 // pred_check_branch
      %63 = sbr.rel (0) target = $region73
    $region72: #{vit_forward.1} parent=1 // pred_region
      _
    $region73: #{vit_forward.1} parent=1 // pred_fallthru
      _
    // Predicated region
    $region74: #{vit_forward.1} parent=1 // pred_check
      _
    $region75: #{vit_forward.1} parent=1 // pred_check_branch
      %65 = sbr.rel (0) target = $region77
    $region76: #{vit_forward.1} parent=1 // pred_region
      _
    $region77: #{vit_forward.1} parent=1 // pred_fallthru
      _
    // Predicated region
    $region78: #{vit_forward.1} parent=1 // pred_check
      _
    $region79: #{vit_forward.1} parent=1 // pred_check_branch
      %67 = sbr.rel (0) target = $region81
    $region80: #{vit_forward.1} parent=1 // pred_region
      _
    $region81: #{vit_forward.1} parent=1 // pred_fallthru
      _
    // Predicated region
    $region82: #{vit_forward.1} parent=1 // pred_check
      _
    $region83: #{vit_forward.1} parent=1 // pred_check_branch
      %69 = sbr.rel (0) target = $region85
    $region84: #{vit_forward.1} parent=1 // pred_region
      _
    $region85: #{vit_forward.1} parent=1 // pred_fallthru
      _
    // Predicated region
    $region86: #{vit_forward.1} parent=1 // pred_check
      _
    $region87: #{vit_forward.1} parent=1 // pred_check_branch
      %71 = sbr.rel (0) target = $region89
    $region88: #{vit_forward.1} parent=1 // pred_region
      _
    $region89: #{vit_forward.1} parent=1 // pred_fallthru
      _
    %v72 = vld [vmem:[%s4] sm:$0xff]
    %v73 = vld [vmem:[%s4 + $0x8] sm:$0xff]
    %v74 = vld [vmem:[%s4 + $0x10] sm:$0xff]
    %v75 = vld [vmem:[%s4 + $0x18] sm:$0xff]
    %v76 = vld [vmem:[%s5] sm:$0xf]
    %v77 = vld [vmem:[%s1] sm:$0xff]
    %v78 = vld [vmem:[%s0] sm:$0xff]
    %v79 = vld [vmem:[%s0 + $0x8] sm:$0xff]
    %v80 = vld [vmem:[%s0 + $0x10] sm:$0xff]
    %v81 = vld [vmem:[%s0 + $0x18] sm:$0xff]
    %v82 = vld [vmem:[%s2] sm:$0xff]
    %v83 = vld [vmem:[%s2 + $0x8] sm:$0xff]
    %v84 = vld [vmem:[%s2 + $0x10] sm:$0xff]
    %v85 = vld [vmem:[%s2 + $0x18] sm:$0xff]
    %v86 = vld [vmem:[%s2 + $0x20] sm:$0xff]
    %v87 = vld [vmem:[%s2 + $0x28] sm:$0xff]
    %v88 = vld [vmem:[%s2 + $0x30] sm:$0xff]
    %v89 = vld [vmem:[%s2 + $0x38] sm:$0xff]
    %v90 = vld [vmem:[%s2 + $0x40] sm:$0xff]
    %v91 = vld [vmem:[%s2 + $0x48] sm:$0xff]
    %v92 = vld [vmem:[%s2 + $0x50] sm:$0xff]
    %v93 = vld [vmem:[%s2 + $0x58] sm:$0xff]
    %v94 = vld [vmem:[%s2 + $0x60] sm:$0xff]
    %v95 = vld [vmem:[%s2 + $0x68] sm:$0xff]
    %v96 = vld [vmem:[%s2 + $0x70] sm:$0xff]
    %v97 = vld [vmem:[%s2 + $0x78] sm:$0xff]
    %v98 = vld [vmem:[%s2 + $0x80] sm:$0xff]
    %v99 = vld [vmem:[%s2 + $0x88] sm:$0xff]
    %v100 = vld [vmem:[%s2 + $0x90] sm:$0xff]
    %v101 = vld [vmem:[%s2 + $0x98] sm:$0xff]
    %v102 = vld [vmem:[%s2 + $0xa0] sm:$0xff]
    %v103 = vld [vmem:[%s2 + $0xa8] sm:$0xff]
    %v104 = vld [vmem:[%s2 + $0xb0] sm:$0xff]
    %v105 = vld [vmem:[%s2 + $0xb8] sm:$0xff]
    %v106 = vld [vmem:[%s3] sm:$0x1]
    %v108 = vlaneseq
    %v109 = vshrl.u32 %v108, 7
    %v110 = vsub.s32 0, %v109
    %v111 = vrot.slane %v106, %v110
    %vm113 = vcmask 523264
    %v115 = vsel %vm113, %v79, 0
    %v118 = vsel %vm113, %v81, 0
    %120 = vmatprep.subr.mxu0 0.0
    %121 = vmatpush1.msra.mxu0 %v82
    %122 = vmatprep.subr.mxu0 0.0
    %123 = vmatpush1.msra.mxu0 %v83
    %124 = vmatprep.subr.mxu0 0.0
    %125 = vmatpush1.msra.mxu0 %v84
    %126 = vmatprep.subr.mxu0 0.0
    %127 = vmatpush1.msra.mxu0 %v85
    %128 = vmatprep.subr.mxu0 0.0
    %129 = vmatpush1.msra.mxu0 %v86
    %130 = vmatprep.subr.mxu0 0.0
    %131 = vmatpush1.msra.mxu0 %v87
    %132 = vmatprep.subr.mxu0 0.0
    %133 = vmatpush1.msra.mxu0 %v88
    %134 = vmatprep.subr.mxu0 0.0
    %135 = vmatpush1.msra.mxu0 %v89
    %136 = vmatprep.subr.mxu0 0.0
    %137 = vmatpush1.msra.mxu0 %v90
    %138 = vmatprep.subr.mxu0 0.0
    %139 = vmatpush1.msra.mxu0 %v91
    %140 = vmatprep.subr.mxu0 0.0
    %141 = vmatpush1.msra.mxu0 %v92
    %142 = vmatprep.subr.mxu0 0.0
    %143 = vmatpush1.msra.mxu0 %v93
    %144 = vmatprep.subr.mxu0 0.0
    %145 = vmatpush1.msra.mxu0 %v94
    %146 = vmatprep.subr.mxu0 0.0
    %147 = vmatpush1.msra.mxu0 %v95
    %148 = vmatprep.subr.mxu0 0.0
    %149 = vmatpush1.msra.mxu0 %v96
    %150 = vmatprep.subr.mxu0 0.0
    %151 = vmatpush1.msra.mxu0 %v97
    %152 = vmatprep.subr.mxu0 0.0
    %153 = vmatpush1.msra.mxu0 %v98
    %154 = vmatprep.subr.mxu0 0.0
    %155 = vmatpush1.msra.mxu0 %v99
    %156 = vmatprep.subr.mxu0 0.0
    %157 = vmatpush1.msra.mxu0 %v100
    %158 = vmatprep.subr.mxu0 0.0
    %159 = vmatpush1.msra.mxu0 %v101
    %160 = vmatprep.subr.mxu0 0.0
    %161 = vmatpush1.msra.mxu0 %v102
    %162 = vmatprep.subr.mxu0 0.0
    %163 = vmatpush1.msra.mxu0 %v103
    %164 = vmatprep.subr.mxu0 0.0
    %165 = vmatpush1.msra.mxu0 %v104
    %166 = vmatprep.subr.mxu0 0.0
    %167 = vmatpush1.msra.mxu0 %v105
    %168 = vmatprep.subr.mxu0 0.0
    %169 = vmatpush1.msra.mxu0 0.0
    %170 = vmatprep.subr.mxu0 0.0
    %171 = vmatpush1.msra.mxu0 0.0
    %172 = vmatprep.subr.mxu0 0.0
    %173 = vmatpush1.msra.mxu0 0.0
    %174 = vmatprep.subr.mxu0 0.0
    %175 = vmatpush1.msra.mxu0 0.0
    %176 = vmatprep.subr.mxu0 0.0
    %177 = vmatpush1.msra.mxu0 0.0
    %178 = vmatprep.subr.mxu0 0.0
    %179 = vmatpush1.msra.mxu0 0.0
    %180 = vmatprep.subr.mxu0 0.0
    %181 = vmatpush1.msra.mxu0 0.0
    %182 = vmatprep.subr.mxu0 0.0
    %183 = vmatpush1.msra.mxu0 0.0
    %184 = vmatprep.mubr.f32.mxu0 %v115
    %185 = vmatmul.mubr.f32.gmra.mrb[0].mxu0 %v78
    %v186 = vpop.f32.mrb[0].mxu0
    %v187 = vadd.f32 %v111, %v186
    %v188 = vpop.f32.mrb[0].mxu0
    %189 = vmatprep.mubr.f32.mxu0 %v118
    %190 = vmatmul.mubr.f32.gmra.mrb[0].mxu0 %v80
    %v191 = vpop.f32.mrb[0].mxu0
    %v192 = vadd.f32 %v111, %v191
    %v193 = vpop.f32.mrb[0].mxu0
    %194 = vdwg.mxu0
    %v195 = vadd.f32 %v187, %v77
    %v196 = vadd.f32 %v192, %v77
    %v197 = vld [vmem:[%s6] sm:$0xff]
    %v198 = vld [vmem:[%s6 + $0x8] sm:$0xff]
    %v199 = vld [vmem:[%s6 + $0x10] sm:$0xff]
    %v200 = vld [vmem:[%s6 + $0x18] sm:$0xff]
    %v201 = vld [vmem:[%s7] sm:$0x1]
    %v203 = vlaneseq
    %v204 = vshrl.u32 %v203, 7
    %v205 = vsub.s32 0, %v204
    %v206 = vrot.slane %v201, %v205
    %vm208 = vcmask 261120
    %v210 = vsel %vm208, %v195, 0
    %v213 = vsel %vm208, %v196, 0
    %215 = vmatprep.subr.mxu0 0.0
    %216 = vmatpush1.msra.mxu0 %v197
    %217 = vmatprep.subr.mxu0 0.0
    %218 = vmatpush1.msra.mxu0 %v198
    %219 = vmatprep.subr.mxu0 0.0
    %220 = vmatpush1.msra.mxu0 %v199
    %221 = vmatprep.subr.mxu0 0.0
    %222 = vmatpush1.msra.mxu0 %v200
    %223 = vmatprep.subr.mxu0 0.0
    %224 = vmatpush1.msra.mxu0 0.0
    %225 = vmatprep.subr.mxu0 0.0
    %226 = vmatpush1.msra.mxu0 0.0
    %227 = vmatprep.subr.mxu0 0.0
    %228 = vmatpush1.msra.mxu0 0.0
    %229 = vmatprep.subr.mxu0 0.0
    %230 = vmatpush1.msra.mxu0 0.0
    %231 = vmatprep.subr.mxu0 0.0
    %232 = vmatpush1.msra.mxu0 0.0
    %233 = vmatprep.subr.mxu0 0.0
    %234 = vmatpush1.msra.mxu0 0.0
    %235 = vmatprep.subr.mxu0 0.0
    %236 = vmatpush1.msra.mxu0 0.0
    %237 = vmatprep.subr.mxu0 0.0
    %238 = vmatpush1.msra.mxu0 0.0
    %239 = vmatprep.subr.mxu0 0.0
    %240 = vmatpush1.msra.mxu0 0.0
    %241 = vmatprep.subr.mxu0 0.0
    %242 = vmatpush1.msra.mxu0 0.0
    %243 = vmatprep.subr.mxu0 0.0
    %244 = vmatpush1.msra.mxu0 0.0
    %245 = vmatprep.subr.mxu0 0.0
    %246 = vmatpush1.msra.mxu0 0.0
    %247 = vmatprep.subr.mxu0 0.0
    %248 = vmatpush1.msra.mxu0 0.0
    %249 = vmatprep.subr.mxu0 0.0
    %250 = vmatpush1.msra.mxu0 0.0
    %251 = vmatprep.subr.mxu0 0.0
    %252 = vmatpush1.msra.mxu0 0.0
    %253 = vmatprep.subr.mxu0 0.0
    %254 = vmatpush1.msra.mxu0 0.0
    %255 = vmatprep.subr.mxu0 0.0
    %256 = vmatpush1.msra.mxu0 0.0
    %257 = vmatprep.subr.mxu0 0.0
    %258 = vmatpush1.msra.mxu0 0.0
    %259 = vmatprep.subr.mxu0 0.0
    %260 = vmatpush1.msra.mxu0 0.0
    %261 = vmatprep.subr.mxu0 0.0
    %262 = vmatpush1.msra.mxu0 0.0
    %263 = vmatprep.subr.mxu0 0.0
    %264 = vmatpush1.msra.mxu0 0.0
    %265 = vmatprep.subr.mxu0 0.0
    %266 = vmatpush1.msra.mxu0 0.0
    %267 = vmatprep.subr.mxu0 0.0
    %268 = vmatpush1.msra.mxu0 0.0
    %269 = vmatprep.subr.mxu0 0.0
    %270 = vmatpush1.msra.mxu0 0.0
    %271 = vmatprep.subr.mxu0 0.0
    %272 = vmatpush1.msra.mxu0 0.0
    %273 = vmatprep.subr.mxu0 0.0
    %274 = vmatpush1.msra.mxu0 0.0
    %275 = vmatprep.subr.mxu0 0.0
    %276 = vmatpush1.msra.mxu0 0.0
    %277 = vmatprep.subr.mxu0 0.0
    %278 = vmatpush1.msra.mxu0 0.0
    %279 = vmatprep.mubr.f32.mxu0 0.0
    %280 = vmatmul.mubr.f32.gmra.mrb[0].mxu0 %v210
    %v281 = vpop.f32.mrb[0].mxu0
    %v282 = vadd.f32 %v206, %v281
    %v283 = vpop.f32.mrb[0].mxu0
    %284 = vmatprep.mubr.f32.mxu0 0.0
    %285 = vmatmul.mubr.f32.gmra.mrb[0].mxu0 %v213
    %v286 = vpop.f32.mrb[0].mxu0
    %v287 = vadd.f32 %v206, %v286
    %v288 = vpop.f32.mrb[0].mxu0
    %289 = vdwg.mxu0
    %v290 = vld [vmem:[%s8] sm:$0xff]
    %v291 = vld [vmem:[%s8 + $0x8] sm:$0xff]
    %v292 = vld [vmem:[%s8 + $0x10] sm:$0xff]
    %v293 = vld [vmem:[%s8 + $0x18] sm:$0xff]
    %v294 = vld [vmem:[%s9] sm:$0x1]
    %v296 = vlaneseq
    %v297 = vshrl.u32 %v296, 7
    %v298 = vsub.s32 0, %v297
    %v299 = vrot.slane %v294, %v298
    %301 = vmatprep.subr.mxu0 0.0
    %302 = vmatpush1.msra.mxu0 %v290
    %303 = vmatprep.subr.mxu0 0.0
    %304 = vmatpush1.msra.mxu0 %v291
    %305 = vmatprep.subr.mxu0 0.0
    %306 = vmatpush1.msra.mxu0 %v292
    %307 = vmatprep.subr.mxu0 0.0
    %308 = vmatpush1.msra.mxu0 %v293
    %309 = vmatprep.subr.mxu0 0.0
    %310 = vmatpush1.msra.mxu0 0.0
    %311 = vmatprep.subr.mxu0 0.0
    %312 = vmatpush1.msra.mxu0 0.0
    %313 = vmatprep.subr.mxu0 0.0
    %314 = vmatpush1.msra.mxu0 0.0
    %315 = vmatprep.subr.mxu0 0.0
    %316 = vmatpush1.msra.mxu0 0.0
    %317 = vmatprep.subr.mxu0 0.0
    %318 = vmatpush1.msra.mxu0 0.0
    %319 = vmatprep.subr.mxu0 0.0
    %320 = vmatpush1.msra.mxu0 0.0
    %321 = vmatprep.subr.mxu0 0.0
    %322 = vmatpush1.msra.mxu0 0.0
    %323 = vmatprep.subr.mxu0 0.0
    %324 = vmatpush1.msra.mxu0 0.0
    %325 = vmatprep.subr.mxu0 0.0
    %326 = vmatpush1.msra.mxu0 0.0
    %327 = vmatprep.subr.mxu0 0.0
    %328 = vmatpush1.msra.mxu0 0.0
    %329 = vmatprep.subr.mxu0 0.0
    %330 = vmatpush1.msra.mxu0 0.0
    %331 = vmatprep.subr.mxu0 0.0
    %332 = vmatpush1.msra.mxu0 0.0
    %333 = vmatprep.subr.mxu0 0.0
    %334 = vmatpush1.msra.mxu0 0.0
    %335 = vmatprep.subr.mxu0 0.0
    %336 = vmatpush1.msra.mxu0 0.0
    %337 = vmatprep.subr.mxu0 0.0
    %338 = vmatpush1.msra.mxu0 0.0
    %339 = vmatprep.subr.mxu0 0.0
    %340 = vmatpush1.msra.mxu0 0.0
    %341 = vmatprep.subr.mxu0 0.0
    %342 = vmatpush1.msra.mxu0 0.0
    %343 = vmatprep.subr.mxu0 0.0
    %344 = vmatpush1.msra.mxu0 0.0
    %345 = vmatprep.subr.mxu0 0.0
    %346 = vmatpush1.msra.mxu0 0.0
    %347 = vmatprep.subr.mxu0 0.0
    %348 = vmatpush1.msra.mxu0 0.0
    %349 = vmatprep.subr.mxu0 0.0
    %350 = vmatpush1.msra.mxu0 0.0
    %351 = vmatprep.subr.mxu0 0.0
    %352 = vmatpush1.msra.mxu0 0.0
    %353 = vmatprep.subr.mxu0 0.0
    %354 = vmatpush1.msra.mxu0 0.0
    %355 = vmatprep.subr.mxu0 0.0
    %356 = vmatpush1.msra.mxu0 0.0
    %357 = vmatprep.subr.mxu0 0.0
    %358 = vmatpush1.msra.mxu0 0.0
    %359 = vmatprep.subr.mxu0 0.0
    %360 = vmatpush1.msra.mxu0 0.0
    %361 = vmatprep.subr.mxu0 0.0
    %362 = vmatpush1.msra.mxu0 0.0
    %363 = vmatprep.subr.mxu0 0.0
    %364 = vmatpush1.msra.mxu0 0.0
    %365 = vmatprep.mubr.f32.mxu0 0.0
    %366 = vmatmul.mubr.f32.gmra.mrb[0].mxu0 %v210
    %v367 = vpop.f32.mrb[0].mxu0
    %v368 = vadd.f32 %v299, %v367
    %v369 = vpop.f32.mrb[0].mxu0
    %370 = vmatprep.mubr.f32.mxu0 0.0
    %371 = vmatmul.mubr.f32.gmra.mrb[0].mxu0 %v213
    %v372 = vpop.f32.mrb[0].mxu0
    %v373 = vadd.f32 %v299, %v372
    %v374 = vpop.f32.mrb[0].mxu0
    %375 = vdwg.mxu0
    %v376 = vld [vmem:[%s10] sm:$0xff]
    %v377 = vld [vmem:[%s10 + $0x8] sm:$0xff]
    %v378 = vld [vmem:[%s10 + $0x10] sm:$0xff]
    %v379 = vld [vmem:[%s10 + $0x18] sm:$0xff]
    %v380 = vld [vmem:[%s11] sm:$0x1]
    %v382 = vlaneseq
    %v383 = vshrl.u32 %v382, 7
    %v384 = vsub.s32 0, %v383
    %v385 = vrot.slane %v380, %v384
    %387 = vmatprep.subr.mxu0 0.0
    %388 = vmatpush1.msra.mxu0 %v376
    %389 = vmatprep.subr.mxu0 0.0
    %390 = vmatpush1.msra.mxu0 %v377
    %391 = vmatprep.subr.mxu0 0.0
    %392 = vmatpush1.msra.mxu0 %v378
    %393 = vmatprep.subr.mxu0 0.0
    %394 = vmatpush1.msra.mxu0 %v379
    %395 = vmatprep.subr.mxu0 0.0
    %396 = vmatpush1.msra.mxu0 0.0
    %397 = vmatprep.subr.mxu0 0.0
    %398 = vmatpush1.msra.mxu0 0.0
    %399 = vmatprep.subr.mxu0 0.0
    %400 = vmatpush1.msra.mxu0 0.0
    %401 = vmatprep.subr.mxu0 0.0
    %402 = vmatpush1.msra.mxu0 0.0
    %403 = vmatprep.subr.mxu0 0.0
    %404 = vmatpush1.msra.mxu0 0.0
    %405 = vmatprep.subr.mxu0 0.0
    %406 = vmatpush1.msra.mxu0 0.0
    %407 = vmatprep.subr.mxu0 0.0
    %408 = vmatpush1.msra.mxu0 0.0
    %409 = vmatprep.subr.mxu0 0.0
    %410 = vmatpush1.msra.mxu0 0.0
    %411 = vmatprep.subr.mxu0 0.0
    %412 = vmatpush1.msra.mxu0 0.0
    %413 = vmatprep.subr.mxu0 0.0
    %414 = vmatpush1.msra.mxu0 0.0
    %415 = vmatprep.subr.mxu0 0.0
    %416 = vmatpush1.msra.mxu0 0.0
    %417 = vmatprep.subr.mxu0 0.0
    %418 = vmatpush1.msra.mxu0 0.0
    %419 = vmatprep.subr.mxu0 0.0
    %420 = vmatpush1.msra.mxu0 0.0
    %421 = vmatprep.subr.mxu0 0.0
    %422 = vmatpush1.msra.mxu0 0.0
    %423 = vmatprep.subr.mxu0 0.0
    %424 = vmatpush1.msra.mxu0 0.0
    %425 = vmatprep.subr.mxu0 0.0
    %426 = vmatpush1.msra.mxu0 0.0
    %427 = vmatprep.subr.mxu0 0.0
    %428 = vmatpush1.msra.mxu0 0.0
    %429 = vmatprep.subr.mxu0 0.0
    %430 = vmatpush1.msra.mxu0 0.0
    %431 = vmatprep.subr.mxu0 0.0
    %432 = vmatpush1.msra.mxu0 0.0
    %433 = vmatprep.subr.mxu0 0.0
    %434 = vmatpush1.msra.mxu0 0.0
    %435 = vmatprep.subr.mxu0 0.0
    %436 = vmatpush1.msra.mxu0 0.0
    %437 = vmatprep.subr.mxu0 0.0
    %438 = vmatpush1.msra.mxu0 0.0
    %439 = vmatprep.subr.mxu0 0.0
    %440 = vmatpush1.msra.mxu0 0.0
    %441 = vmatprep.subr.mxu0 0.0
    %442 = vmatpush1.msra.mxu0 0.0
    %443 = vmatprep.subr.mxu0 0.0
    %444 = vmatpush1.msra.mxu0 0.0
    %445 = vmatprep.subr.mxu0 0.0
    %446 = vmatpush1.msra.mxu0 0.0
    %447 = vmatprep.subr.mxu0 0.0
    %448 = vmatpush1.msra.mxu0 0.0
    %449 = vmatprep.subr.mxu0 0.0
    %450 = vmatpush1.msra.mxu0 0.0
    %451 = vmatprep.mubr.f32.mxu0 0.0
    %452 = vmatmul.mubr.f32.gmra.mrb[0].mxu0 %v210
    %v453 = vpop.f32.mrb[0].mxu0
    %v454 = vadd.f32 %v385, %v453
    %v455 = vpop.f32.mrb[0].mxu0
    %456 = vmatprep.mubr.f32.mxu0 0.0
    %457 = vmatmul.mubr.f32.gmra.mrb[0].mxu0 %v213
    %v458 = vpop.f32.mrb[0].mxu0
    %v459 = vadd.f32 %v385, %v458
    %v460 = vpop.f32.mrb[0].mxu0
    %461 = vdwg.mxu0
    %v462 = vmul.f32 %v282, %v368
    %v463 = vmul.f32 %v282, %v373
    %v464 = vmul.f32 %v287, %v368
    %v465 = vmul.f32 %v287, %v373
    %v467 = vsel %vm208, %v462, 0
    %v470 = vsel %vm208, %v463, 0
    %v473 = vsel %vm208, %v464, 0
    %v476 = vsel %vm208, %v465, 0
    %478 = vmatprep.subr.mxu0 0.0
    %479 = vmatpush1.msra.mxu0 %v72
    %480 = vmatprep.subr.mxu0 0.0
    %481 = vmatpush1.msra.mxu0 %v73
    %482 = vmatprep.subr.mxu0 0.0
    %483 = vmatpush1.msra.mxu0 %v74
    %484 = vmatprep.subr.mxu0 0.0
    %485 = vmatpush1.msra.mxu0 %v75
    %486 = vmatprep.subr.mxu0 0.0
    %487 = vmatpush1.msra.mxu0 0.0
    %488 = vmatprep.subr.mxu0 0.0
    %489 = vmatpush1.msra.mxu0 0.0
    %490 = vmatprep.subr.mxu0 0.0
    %491 = vmatpush1.msra.mxu0 0.0
    %492 = vmatprep.subr.mxu0 0.0
    %493 = vmatpush1.msra.mxu0 0.0
    %494 = vmatprep.subr.mxu0 0.0
    %495 = vmatpush1.msra.mxu0 0.0
    %496 = vmatprep.subr.mxu0 0.0
    %497 = vmatpush1.msra.mxu0 0.0
    %498 = vmatprep.subr.mxu0 0.0
    %499 = vmatpush1.msra.mxu0 0.0
    %500 = vmatprep.subr.mxu0 0.0
    %501 = vmatpush1.msra.mxu0 0.0
    %502 = vmatprep.subr.mxu0 0.0
    %503 = vmatpush1.msra.mxu0 0.0
    %504 = vmatprep.subr.mxu0 0.0
    %505 = vmatpush1.msra.mxu0 0.0
    %506 = vmatprep.subr.mxu0 0.0
    %507 = vmatpush1.msra.mxu0 0.0
    %508 = vmatprep.subr.mxu0 0.0
    %509 = vmatpush1.msra.mxu0 0.0
    %510 = vmatprep.subr.mxu0 0.0
    %511 = vmatpush1.msra.mxu0 0.0
    %512 = vmatprep.subr.mxu0 0.0
    %513 = vmatpush1.msra.mxu0 0.0
    %514 = vmatprep.subr.mxu0 0.0
    %515 = vmatpush1.msra.mxu0 0.0
    %516 = vmatprep.subr.mxu0 0.0
    %517 = vmatpush1.msra.mxu0 0.0
    %518 = vmatprep.subr.mxu0 0.0
    %519 = vmatpush1.msra.mxu0 0.0
    %520 = vmatprep.subr.mxu0 0.0
    %521 = vmatpush1.msra.mxu0 0.0
    %522 = vmatprep.subr.mxu0 0.0
    %523 = vmatpush1.msra.mxu0 0.0
    %524 = vmatprep.subr.mxu0 0.0
    %525 = vmatpush1.msra.mxu0 0.0
    %526 = vmatprep.subr.mxu0 0.0
    %527 = vmatpush1.msra.mxu0 0.0
    %528 = vmatprep.subr.mxu0 0.0
    %529 = vmatpush1.msra.mxu0 0.0
    %530 = vmatprep.subr.mxu0 0.0
    %531 = vmatpush1.msra.mxu0 0.0
    %532 = vmatprep.subr.mxu0 0.0
    %533 = vmatpush1.msra.mxu0 0.0
    %534 = vmatprep.subr.mxu0 0.0
    %535 = vmatpush1.msra.mxu0 0.0
    %536 = vmatprep.subr.mxu0 0.0
    %537 = vmatpush1.msra.mxu0 0.0
    %538 = vmatprep.subr.mxu0 0.0
    %539 = vmatpush1.msra.mxu0 0.0
    %540 = vmatprep.subr.mxu0 0.0
    %541 = vmatpush1.msra.mxu0 0.0
    %542 = vmatprep.mubr.f32.mxu0 0.0
    %543 = vmatmul.mubr.f32.gmra.mrb[0].mxu0 %v467
    %v544 = vpop.f32.mrb[0].mxu0
    %v545 = vadd.f32 0.0, %v544
    %v546 = vpop.f32.mrb[0].mxu0
    %547 = vmatprep.mubr.f32.mxu0 0.0
    %548 = vmatmul.mubr.f32.gmra.mrb[0].mxu0 %v470
    %v549 = vpop.f32.mrb[0].mxu0
    %v550 = vadd.f32 0.0, %v549
    %v551 = vpop.f32.mrb[0].mxu0
    %552 = vmatprep.mubr.f32.mxu0 0.0
    %553 = vmatmul.mubr.f32.gmra.mrb[0].mxu0 %v473
    %v554 = vpop.f32.mrb[0].mxu0
    %v555 = vadd.f32 0.0, %v554
    %v556 = vpop.f32.mrb[0].mxu0
    %557 = vmatprep.mubr.f32.mxu0 0.0
    %558 = vmatmul.mubr.f32.gmra.mrb[0].mxu0 %v476
    %v559 = vpop.f32.mrb[0].mxu0
    %v560 = vadd.f32 0.0, %v559
    %v561 = vpop.f32.mrb[0].mxu0
    %562 = vdwg.mxu0
    %v563 = vmax.f32 %v545, %v550
    %v564 = vmax.f32 %v555, %v560
    %v565 = vsub.f32 %v545, %v563
    %v566 = vsub.f32 %v550, %v563
    %v567 = vsub.f32 %v555, %v564
    %v568 = vsub.f32 %v560, %v564
    %v569 = vmul.f32 %v565, 1.442695
    %v570 = vpow.pop %v569
    %v571 = vmul.f32 %v566, 1.442695
    %v572 = vpow.pop %v571
    %v573 = vmul.f32 %v567, 1.442695
    %v574 = vpow.pop %v573
    %v575 = vmul.f32 %v568, 1.442695
    %v576 = vpow.pop %v575
    %v577 = vadd.f32 %v570, %v572
    %v578 = vadd.f32 %v574, %v576
    %v579 = vrcp.pop %v577
    %v580 = vrcp.pop %v578
    %v581 = vmul.f32 %v570, %v579
    %v582 = vmul.f32 %v572, %v579
    %v583 = vmul.f32 %v574, %v580
    %v584 = vmul.f32 %v576, %v580
    %vm585 = vcmask 31744
    %v587 = vsel %vm585, %v581, 0
    %v590 = vsel %vm585, %v582, 0
    %v593 = vsel %vm585, %v583, 0
    %v596 = vsel %vm585, %v584, 0
    %vm598 = vcmask 1043456
    %v600 = vsel %vm598, %v76, 0
    %602 = vmatprep.subr.mxu0 0.0
    %603 = vmatpush1.msra.mxu0 %v600
    %604 = vmatprep.subr.mxu0 0.0
    %605 = vmatpush1.msra.mxu0 0.0
    %606 = vmatprep.subr.mxu0 0.0
    %607 = vmatpush1.msra.mxu0 0.0
    %608 = vmatprep.subr.mxu0 0.0
    %609 = vmatpush1.msra.mxu0 0.0
    %610 = vmatprep.subr.mxu0 0.0
    %611 = vmatpush1.msra.mxu0 0.0
    %612 = vmatprep.subr.mxu0 0.0
    %613 = vmatpush1.msra.mxu0 0.0
    %614 = vmatprep.subr.mxu0 0.0
    %615 = vmatpush1.msra.mxu0 0.0
    %616 = vmatprep.subr.mxu0 0.0
    %617 = vmatpush1.msra.mxu0 0.0
    %618 = vmatprep.subr.mxu0 0.0
    %619 = vmatpush1.msra.mxu0 0.0
    %620 = vmatprep.subr.mxu0 0.0
    %621 = vmatpush1.msra.mxu0 0.0
    %622 = vmatprep.subr.mxu0 0.0
    %623 = vmatpush1.msra.mxu0 0.0
    %624 = vmatprep.subr.mxu0 0.0
    %625 = vmatpush1.msra.mxu0 0.0
    %626 = vmatprep.subr.mxu0 0.0
    %627 = vmatpush1.msra.mxu0 0.0
    %628 = vmatprep.subr.mxu0 0.0
    %629 = vmatpush1.msra.mxu0 0.0
    %630 = vmatprep.subr.mxu0 0.0
    %631 = vmatpush1.msra.mxu0 0.0
    %632 = vmatprep.subr.mxu0 0.0
    %633 = vmatpush1.msra.mxu0 0.0
    %634 = vmatprep.subr.mxu0 0.0
    %635 = vmatpush1.msra.mxu0 0.0
    %636 = vmatprep.subr.mxu0 0.0
    %637 = vmatpush1.msra.mxu0 0.0
    %638 = vmatprep.subr.mxu0 0.0
    %639 = vmatpush1.msra.mxu0 0.0
    %640 = vmatprep.subr.mxu0 0.0
    %641 = vmatpush1.msra.mxu0 0.0
    %642 = vmatprep.subr.mxu0 0.0
    %643 = vmatpush1.msra.mxu0 0.0
    %644 = vmatprep.subr.mxu0 0.0
    %645 = vmatpush1.msra.mxu0 0.0
    %646 = vmatprep.subr.mxu0 0.0
    %647 = vmatpush1.msra.mxu0 0.0
    %648 = vmatprep.subr.mxu0 0.0
    %649 = vmatpush1.msra.mxu0 0.0
    %650 = vmatprep.subr.mxu0 0.0
    %651 = vmatpush1.msra.mxu0 0.0
    %652 = vmatprep.subr.mxu0 0.0
    %653 = vmatpush1.msra.mxu0 0.0
    %654 = vmatprep.subr.mxu0 0.0
    %655 = vmatpush1.msra.mxu0 0.0
    %656 = vmatprep.subr.mxu0 0.0
    %657 = vmatpush1.msra.mxu0 0.0
    %658 = vmatprep.subr.mxu0 0.0
    %659 = vmatpush1.msra.mxu0 0.0
    %660 = vmatprep.subr.mxu0 0.0
    %661 = vmatpush1.msra.mxu0 0.0
    %662 = vmatprep.subr.mxu0 0.0
    %663 = vmatpush1.msra.mxu0 0.0
    %664 = vmatprep.subr.mxu0 0.0
    %665 = vmatpush1.msra.mxu0 0.0
    %666 = vmatprep.mubr.f32.mxu0 0.0
    %667 = vmatmul.mubr.f32.gmra.mrb[0].mxu0 %v587
    %v668 = vpop.f32.mrb[0].mxu0
    %v669 = vadd.f32 0.0, %v668
    %v670 = vpop.f32.mrb[0].mxu0
    %671 = vmatprep.mubr.f32.mxu0 0.0
    %672 = vmatmul.mubr.f32.gmra.mrb[0].mxu0 %v590
    %v673 = vpop.f32.mrb[0].mxu0
    %v674 = vadd.f32 0.0, %v673
    %v675 = vpop.f32.mrb[0].mxu0
    %676 = vmatprep.mubr.f32.mxu0 0.0
    %677 = vmatmul.mubr.f32.gmra.mrb[0].mxu0 %v593
    %v678 = vpop.f32.mrb[0].mxu0
    %v679 = vadd.f32 0.0, %v678
    %v680 = vpop.f32.mrb[0].mxu0
    %681 = vmatprep.mubr.f32.mxu0 0.0
    %682 = vmatmul.mubr.f32.gmra.mrb[0].mxu0 %v596
    %v683 = vpop.f32.mrb[0].mxu0
    %v684 = vadd.f32 0.0, %v683
    %v685 = vpop.f32.mrb[0].mxu0
    %686 = vdwg.mxu0
    %v687 = vmul.f32 %v669, %v454
    %v688 = vmul.f32 %v674, %v459
    %v689 = vmul.f32 %v679, %v454
    %v690 = vmul.f32 %v684, %v459
    %v691 = vadd.f32 %v687, %v688
    %v692 = vadd.f32 %v689, %v690
    %v693 = vld [vmem:[%s12] sm:$0xff]
    %v694 = vld [vmem:[%s12 + $0x8] sm:$0xff]
    %v695 = vld [vmem:[%s12 + $0x10] sm:$0xff]
    %v696 = vld [vmem:[%s12 + $0x18] sm:$0xff]
    %v697 = vld [vmem:[%s13] sm:$0x1]
    %v699 = vlaneseq
    %v700 = vshrl.u32 %v699, 7
    %v701 = vsub.s32 0, %v700
    %v702 = vrot.slane %v697, %v701
    %v705 = vsel %vm208, %v691, 0
    %v708 = vsel %vm208, %v692, 0
    %710 = vmatprep.subr.mxu0 0.0
    %711 = vmatpush1.msra.mxu0 %v693
    %712 = vmatprep.subr.mxu0 0.0
    %713 = vmatpush1.msra.mxu0 %v694
    %714 = vmatprep.subr.mxu0 0.0
    %715 = vmatpush1.msra.mxu0 %v695
    %716 = vmatprep.subr.mxu0 0.0
    %717 = vmatpush1.msra.mxu0 %v696
    %718 = vmatprep.subr.mxu0 0.0
    %719 = vmatpush1.msra.mxu0 0.0
    %720 = vmatprep.subr.mxu0 0.0
    %721 = vmatpush1.msra.mxu0 0.0
    %722 = vmatprep.subr.mxu0 0.0
    %723 = vmatpush1.msra.mxu0 0.0
    %724 = vmatprep.subr.mxu0 0.0
    %725 = vmatpush1.msra.mxu0 0.0
    %726 = vmatprep.subr.mxu0 0.0
    %727 = vmatpush1.msra.mxu0 0.0
    %728 = vmatprep.subr.mxu0 0.0
    %729 = vmatpush1.msra.mxu0 0.0
    %730 = vmatprep.subr.mxu0 0.0
    %731 = vmatpush1.msra.mxu0 0.0
    %732 = vmatprep.subr.mxu0 0.0
    %733 = vmatpush1.msra.mxu0 0.0
    %734 = vmatprep.subr.mxu0 0.0
    %735 = vmatpush1.msra.mxu0 0.0
    %736 = vmatprep.subr.mxu0 0.0
    %737 = vmatpush1.msra.mxu0 0.0
    %738 = vmatprep.subr.mxu0 0.0
    %739 = vmatpush1.msra.mxu0 0.0
    %740 = vmatprep.subr.mxu0 0.0
    %741 = vmatpush1.msra.mxu0 0.0
    %742 = vmatprep.subr.mxu0 0.0
    %743 = vmatpush1.msra.mxu0 0.0
    %744 = vmatprep.subr.mxu0 0.0
    %745 = vmatpush1.msra.mxu0 0.0
    %746 = vmatprep.subr.mxu0 0.0
    %747 = vmatpush1.msra.mxu0 0.0
    %748 = vmatprep.subr.mxu0 0.0
    %749 = vmatpush1.msra.mxu0 0.0
    %750 = vmatprep.subr.mxu0 0.0
    %751 = vmatpush1.msra.mxu0 0.0
    %752 = vmatprep.subr.mxu0 0.0
    %753 = vmatpush1.msra.mxu0 0.0
    %754 = vmatprep.subr.mxu0 0.0
    %755 = vmatpush1.msra.mxu0 0.0
    %756 = vmatprep.subr.mxu0 0.0
    %757 = vmatpush1.msra.mxu0 0.0
    %758 = vmatprep.subr.mxu0 0.0
    %759 = vmatpush1.msra.mxu0 0.0
    %760 = vmatprep.subr.mxu0 0.0
    %761 = vmatpush1.msra.mxu0 0.0
    %762 = vmatprep.subr.mxu0 0.0
    %763 = vmatpush1.msra.mxu0 0.0
    %764 = vmatprep.subr.mxu0 0.0
    %765 = vmatpush1.msra.mxu0 0.0
    %766 = vmatprep.subr.mxu0 0.0
    %767 = vmatpush1.msra.mxu0 0.0
    %768 = vmatprep.subr.mxu0 0.0
    %769 = vmatpush1.msra.mxu0 0.0
    %770 = vmatprep.subr.mxu0 0.0
    %771 = vmatpush1.msra.mxu0 0.0
    %772 = vmatprep.subr.mxu0 0.0
    %773 = vmatpush1.msra.mxu0 0.0
    %774 = vmatprep.mubr.f32.mxu0 0.0
    %775 = vmatmul.mubr.f32.gmra.mrb[0].mxu0 %v705
    %v776 = vpop.f32.mrb[0].mxu0
    %v777 = vadd.f32 %v702, %v776
    %v778 = vpop.f32.mrb[0].mxu0
    %779 = vmatprep.mubr.f32.mxu0 0.0
    %780 = vmatmul.mubr.f32.gmra.mrb[0].mxu0 %v708
    %v781 = vpop.f32.mrb[0].mxu0
    %v782 = vadd.f32 %v702, %v781
    %v783 = vpop.f32.mrb[0].mxu0
    %784 = vdwg.mxu0
    %v785 = vadd.f32 %v195, %v777
    %v786 = vadd.f32 %v196, %v782
    %v787 = vld [vmem:[%s14] sm:$0x1]
    %v788 = vld [vmem:[%s15] sm:$0x1]
    %v789 = vsel %vm208, %v785, 0.0
    %790 = vadd.xlane.f32.xlu0 %v789
    %v791 = vpop.xlane.xlu0 %790
    %v792 = vsel %vm208, %v786, 0.0
    %793 = vadd.xlane.f32.xlu0 %v792
    %v794 = vpop.xlane.xlu0 %793
    %v795 = vrcp.pop 32.0
    %v796 = vmul.f32 %v791, %v795
    %v797 = vmul.f32 %v794, %v795
    %v798 = vsub.f32 %v785, %v796
    %v799 = vsub.f32 %v786, %v797
    %v800 = vmul.f32 %v798, %v798
    %v801 = vmul.f32 %v799, %v799
    %v802 = vsel %vm208, %v800, 0.0
    %803 = vadd.xlane.f32.xlu0 %v802
    %v804 = vpop.xlane.xlu0 %803
    %v805 = vsel %vm208, %v801, 0.0
    %806 = vadd.xlane.f32.xlu0 %v805
    %v807 = vpop.xlane.xlu0 %806
    %v808 = vmul.f32 %v804, %v795
    %v809 = vmul.f32 %v807, %v795
    %v810 = vadd.f32 %v808, 1e-05
    %v811 = vadd.f32 %v809, 1e-05
    %v812 = vrsqrt.pop %v810
    %v813 = vrsqrt.pop %v811
    %v814 = vmul.f32 %v798, %v812
    %v815 = vmul.f32 %v799, %v813
    %v817 = vlaneseq
    %v818 = vshrl.u32 %v817, 7
    %v819 = vsub.s32 0, %v818
    %v820 = vrot.slane %v787, %v819
    %v822 = vmul.f32 %v814, %v820
    %v823 = vmul.f32 %v815, %v820
    %v825 = vlaneseq
    %v826 = vshrl.u32 %v825, 7
    %v827 = vsub.s32 0, %v826
    %v828 = vrot.slane %v788, %v827
    %v830 = vadd.f32 %v822, %v828
    %v831 = vadd.f32 %v823, %v828
    %v832 = vld [vmem:[%s16] sm:$0xff]
    %v833 = vld [vmem:[%s16 + $0x8] sm:$0xff]
    %v834 = vld [vmem:[%s16 + $0x10] sm:$0xff]
    %v835 = vld [vmem:[%s16 + $0x18] sm:$0xff]
    %v836 = vld [vmem:[%s17] sm:$0x1]
    %v838 = vlaneseq
    %v839 = vshrl.u32 %v838, 7
    %v840 = vsub.s32 0, %v839
    %v841 = vrot.slane %v836, %v840
    %v844 = vsel %vm208, %v830, 0
    %v847 = vsel %vm208, %v831, 0
    %849 = vmatprep.subr.mxu0 0.0
    %850 = vmatpush1.msra.mxu0 %v832
    %851 = vmatprep.subr.mxu0 0.0
    %852 = vmatpush1.msra.mxu0 %v833
    %853 = vmatprep.subr.mxu0 0.0
    %854 = vmatpush1.msra.mxu0 %v834
    %855 = vmatprep.subr.mxu0 0.0
    %856 = vmatpush1.msra.mxu0 %v835
    %857 = vmatprep.subr.mxu0 0.0
    %858 = vmatpush1.msra.mxu0 0.0
    %859 = vmatprep.subr.mxu0 0.0
    %860 = vmatpush1.msra.mxu0 0.0
    %861 = vmatprep.subr.mxu0 0.0
    %862 = vmatpush1.msra.mxu0 0.0
    %863 = vmatprep.subr.mxu0 0.0
    %864 = vmatpush1.msra.mxu0 0.0
    %865 = vmatprep.subr.mxu0 0.0
    %866 = vmatpush1.msra.mxu0 0.0
    %867 = vmatprep.subr.mxu0 0.0
    %868 = vmatpush1.msra.mxu0 0.0
    %869 = vmatprep.subr.mxu0 0.0
    %870 = vmatpush1.msra.mxu0 0.0
    %871 = vmatprep.subr.mxu0 0.0
    %872 = vmatpush1.msra.mxu0 0.0
    %873 = vmatprep.subr.mxu0 0.0
    %874 = vmatpush1.msra.mxu0 0.0
    %875 = vmatprep.subr.mxu0 0.0
    %876 = vmatpush1.msra.mxu0 0.0
    %877 = vmatprep.subr.mxu0 0.0
    %878 = vmatpush1.msra.mxu0 0.0
    %879 = vmatprep.subr.mxu0 0.0
    %880 = vmatpush1.msra.mxu0 0.0
    %881 = vmatprep.subr.mxu0 0.0
    %882 = vmatpush1.msra.mxu0 0.0
    %883 = vmatprep.subr.mxu0 0.0
    %884 = vmatpush1.msra.mxu0 0.0
    %885 = vmatprep.subr.mxu0 0.0
    %886 = vmatpush1.msra.mxu0 0.0
    %887 = vmatprep.subr.mxu0 0.0
    %888 = vmatpush1.msra.mxu0 0.0
    %889 = vmatprep.subr.mxu0 0.0
    %890 = vmatpush1.msra.mxu0 0.0
    %891 = vmatprep.subr.mxu0 0.0
    %892 = vmatpush1.msra.mxu0 0.0
    %893 = vmatprep.subr.mxu0 0.0
    %894 = vmatpush1.msra.mxu0 0.0
    %895 = vmatprep.subr.mxu0 0.0
    %896 = vmatpush1.msra.mxu0 0.0
    %897 = vmatprep.subr.mxu0 0.0
    %898 = vmatpush1.msra.mxu0 0.0
    %899 = vmatprep.subr.mxu0 0.0
    %900 = vmatpush1.msra.mxu0 0.0
    %901 = vmatprep.subr.mxu0 0.0
    %902 = vmatpush1.msra.mxu0 0.0
    %903 = vmatprep.subr.mxu0 0.0
    %904 = vmatpush1.msra.mxu0 0.0
    %905 = vmatprep.subr.mxu0 0.0
    %906 = vmatpush1.msra.mxu0 0.0
    %907 = vmatprep.subr.mxu0 0.0
    %908 = vmatpush1.msra.mxu0 0.0
    %909 = vmatprep.subr.mxu0 0.0
    %910 = vmatpush1.msra.mxu0 0.0
    %911 = vmatprep.subr.mxu0 0.0
    %912 = vmatpush1.msra.mxu0 0.0
    %913 = vmatprep.mubr.f32.mxu0 0.0
    %914 = vmatmul.mubr.f32.gmra.mrb[0].mxu0 %v844
    %v915 = vpop.f32.mrb[0].mxu0
    %v916 = vadd.f32 %v841, %v915
    %v917 = vpop.f32.mrb[0].mxu0
    %918 = vmatprep.mubr.f32.mxu0 0.0
    %919 = vmatmul.mubr.f32.gmra.mrb[0].mxu0 %v847
    %v920 = vpop.f32.mrb[0].mxu0
    %v921 = vadd.f32 %v841, %v920
    %v922 = vpop.f32.mrb[0].mxu0
    %923 = vdwg.mxu0
    %v924 = vmax.f32 %v916, 0.0
    %v925 = vmax.f32 %v921, 0.0
    %v926 = vld [vmem:[%s18] sm:$0xff]
    %v927 = vld [vmem:[%s18 + $0x8] sm:$0xff]
    %v928 = vld [vmem:[%s18 + $0x10] sm:$0xff]
    %v929 = vld [vmem:[%s18 + $0x18] sm:$0xff]
    %v930 = vld [vmem:[%s18 + $0x20] sm:$0xff]
    %v931 = vld [vmem:[%s18 + $0x28] sm:$0xff]
    %v932 = vld [vmem:[%s18 + $0x30] sm:$0xff]
    %v933 = vld [vmem:[%s18 + $0x38] sm:$0xff]
    %v934 = vld [vmem:[%s18 + $0x40] sm:$0xff]
    %v935 = vld [vmem:[%s18 + $0x48] sm:$0xff]
    %v936 = vld [vmem:[%s18 + $0x50] sm:$0xff]
    %v937 = vld [vmem:[%s18 + $0x58] sm:$0xff]
    %v938 = vld [vmem:[%s18 + $0x60] sm:$0xff]
    %v939 = vld [vmem:[%s18 + $0x68] sm:$0xff]
    %v940 = vld [vmem:[%s18 + $0x70] sm:$0xff]
    %v941 = vld [vmem:[%s18 + $0x78] sm:$0xff]
    %v942 = vld [vmem:[%s19] sm:$0x1]
    %v944 = vlaneseq
    %v945 = vshrl.u32 %v944, 7
    %v946 = vsub.s32 0, %v945
    %v947 = vrot.slane %v942, %v946
    %949 = vmatprep.subr.mxu0 0.0
    %950 = vmatpush1.msra.mxu0 %v926
    %951 = vmatprep.subr.mxu0 0.0
    %952 = vmatpush1.msra.mxu0 %v927
    %953 = vmatprep.subr.mxu0 0.0
    %954 = vmatpush1.msra.mxu0 %v928
    %955 = vmatprep.subr.mxu0 0.0
    %956 = vmatpush1.msra.mxu0 %v929
    %957 = vmatprep.subr.mxu0 0.0
    %958 = vmatpush1.msra.mxu0 %v930
    %959 = vmatprep.subr.mxu0 0.0
    %960 = vmatpush1.msra.mxu0 %v931
    %961 = vmatprep.subr.mxu0 0.0
    %962 = vmatpush1.msra.mxu0 %v932
    %963 = vmatprep.subr.mxu0 0.0
    %964 = vmatpush1.msra.mxu0 %v933
    %965 = vmatprep.subr.mxu0 0.0
    %966 = vmatpush1.msra.mxu0 %v934
    %967 = vmatprep.subr.mxu0 0.0
    %968 = vmatpush1.msra.mxu0 %v935
    %969 = vmatprep.subr.mxu0 0.0
    %970 = vmatpush1.msra.mxu0 %v936
    %971 = vmatprep.subr.mxu0 0.0
    %972 = vmatpush1.msra.mxu0 %v937
    %973 = vmatprep.subr.mxu0 0.0
    %974 = vmatpush1.msra.mxu0 %v938
    %975 = vmatprep.subr.mxu0 0.0
    %976 = vmatpush1.msra.mxu0 %v939
    %977 = vmatprep.subr.mxu0 0.0
    %978 = vmatpush1.msra.mxu0 %v940
    %979 = vmatprep.subr.mxu0 0.0
    %980 = vmatpush1.msra.mxu0 %v941
    %981 = vmatprep.subr.mxu0 0.0
    %982 = vmatpush1.msra.mxu0 0.0
    %983 = vmatprep.subr.mxu0 0.0
    %984 = vmatpush1.msra.mxu0 0.0
    %985 = vmatprep.subr.mxu0 0.0
    %986 = vmatpush1.msra.mxu0 0.0
    %987 = vmatprep.subr.mxu0 0.0
    %988 = vmatpush1.msra.mxu0 0.0
    %989 = vmatprep.subr.mxu0 0.0
    %990 = vmatpush1.msra.mxu0 0.0
    %991 = vmatprep.subr.mxu0 0.0
    %992 = vmatpush1.msra.mxu0 0.0
    %993 = vmatprep.subr.mxu0 0.0
    %994 = vmatpush1.msra.mxu0 0.0
    %995 = vmatprep.subr.mxu0 0.0
    %996 = vmatpush1.msra.mxu0 0.0
    %997 = vmatprep.subr.mxu0 0.0
    %998 = vmatpush1.msra.mxu0 0.0
    %999 = vmatprep.subr.mxu0 0.0
    %1000 = vmatpush1.msra.mxu0 0.0
    %1001 = vmatprep.subr.mxu0 0.0
    %1002 = vmatpush1.msra.mxu0 0.0
    %1003 = vmatprep.subr.mxu0 0.0
    %1004 = vmatpush1.msra.mxu0 0.0
    %1005 = vmatprep.subr.mxu0 0.0
    %1006 = vmatpush1.msra.mxu0 0.0
    %1007 = vmatprep.subr.mxu0 0.0
    %1008 = vmatpush1.msra.mxu0 0.0
    %1009 = vmatprep.subr.mxu0 0.0
    %1010 = vmatpush1.msra.mxu0 0.0
    %1011 = vmatprep.subr.mxu0 0.0
    %1012 = vmatpush1.msra.mxu0 0.0
    %1013 = vmatprep.mubr.f32.mxu0 0.0
    %1014 = vmatmul.mubr.f32.gmra.mrb[0].mxu0 %v924
    %v1015 = vpop.f32.mrb[0].mxu0
    %v1016 = vadd.f32 %v947, %v1015
    %v1017 = vpop.f32.mrb[0].mxu0
    %1018 = vmatprep.mubr.f32.mxu0 0.0
    %1019 = vmatmul.mubr.f32.gmra.mrb[0].mxu0 %v925
    %v1020 = vpop.f32.mrb[0].mxu0
    %v1021 = vadd.f32 %v947, %v1020
    %v1022 = vpop.f32.mrb[0].mxu0
    %1023 = vdwg.mxu0
    %v1024 = vadd.f32 %v830, %v1016
    %v1025 = vadd.f32 %v831, %v1021
    %v1026 = vld [vmem:[%s20] sm:$0x1]
    %v1027 = vld [vmem:[%s21] sm:$0x1]
    %v1028 = vsel %vm208, %v1024, 0.0
    %1029 = vadd.xlane.f32.xlu0 %v1028
    %v1030 = vpop.xlane.xlu0 %1029
    %v1031 = vsel %vm208, %v1025, 0.0
    %1032 = vadd.xlane.f32.xlu0 %v1031
    %v1033 = vpop.xlane.xlu0 %1032
    %v1034 = vmul.f32 %v1030, %v795
    %v1035 = vmul.f32 %v1033, %v795
    %v1036 = vsub.f32 %v1024, %v1034
    %v1037 = vsub.f32 %v1025, %v1035
    %v1038 = vmul.f32 %v1036, %v1036
    %v1039 = vmul.f32 %v1037, %v1037
    %v1040 = vsel %vm208, %v1038, 0.0
    %1041 = vadd.xlane.f32.xlu0 %v1040
    %v1042 = vpop.xlane.xlu0 %1041
    %v1043 = vsel %vm208, %v1039, 0.0
    %1044 = vadd.xlane.f32.xlu0 %v1043
    %v1045 = vpop.xlane.xlu0 %1044
    %v1046 = vmul.f32 %v1042, %v795
    %v1047 = vmul.f32 %v1045, %v795
    %v1048 = vadd.f32 %v1046, 1e-05
    %v1049 = vadd.f32 %v1047, 1e-05
    %v1050 = vrsqrt.pop %v1048
    %v1051 = vrsqrt.pop %v1049
    %v1052 = vmul.f32 %v1036, %v1050
    %v1053 = vmul.f32 %v1037, %v1051
    %v1055 = vlaneseq
    %v1056 = vshrl.u32 %v1055, 7
    %v1057 = vsub.s32 0, %v1056
    %v1058 = vrot.slane %v1026, %v1057
    %v1060 = vmul.f32 %v1052, %v1058
    %v1061 = vmul.f32 %v1053, %v1058
    %v1063 = vlaneseq
    %v1064 = vshrl.u32 %v1063, 7
    %v1065 = vsub.s32 0, %v1064
    %v1066 = vrot.slane %v1027, %v1065
    %v1068 = vadd.f32 %v1060, %v1066
    %v1069 = vadd.f32 %v1061, %v1066
    %s1070 = scalar_lea.vmem %s6, 32
    %v1071 = vld [vmem:[%s1070] sm:$0xff]
    %v1072 = vld [vmem:[%s1070 + $0x8] sm:$0xff]
    %v1073 = vld [vmem:[%s1070 + $0x10] sm:$0xff]
    %v1074 = vld [vmem:[%s1070 + $0x18] sm:$0xff]
    %s1075 = scalar_lea.vmem %s7, 1
    %v1076 = vld [vmem:[%s1075] sm:$0x1]
    %v1078 = vlaneseq
    %v1079 = vshrl.u32 %v1078, 7
    %v1080 = vsub.s32 0, %v1079
    %v1081 = vrot.slane %v1076, %v1080
    %v1084 = vsel %vm208, %v1068, 0
    %v1087 = vsel %vm208, %v1069, 0
    %1089 = vmatprep.subr.mxu0 0.0
    %1090 = vmatpush1.msra.mxu0 %v1071
    %1091 = vmatprep.subr.mxu0 0.0
    %1092 = vmatpush1.msra.mxu0 %v1072
    %1093 = vmatprep.subr.mxu0 0.0
    %1094 = vmatpush1.msra.mxu0 %v1073
    %1095 = vmatprep.subr.mxu0 0.0
    %1096 = vmatpush1.msra.mxu0 %v1074
    %1097 = vmatprep.subr.mxu0 0.0
    %1098 = vmatpush1.msra.mxu0 0.0
    %1099 = vmatprep.subr.mxu0 0.0
    %1100 = vmatpush1.msra.mxu0 0.0
    %1101 = vmatprep.subr.mxu0 0.0
    %1102 = vmatpush1.msra.mxu0 0.0
    %1103 = vmatprep.subr.mxu0 0.0
    %1104 = vmatpush1.msra.mxu0 0.0
    %1105 = vmatprep.subr.mxu0 0.0
    %1106 = vmatpush1.msra.mxu0 0.0
    %1107 = vmatprep.subr.mxu0 0.0
    %1108 = vmatpush1.msra.mxu0 0.0
    %1109 = vmatprep.subr.mxu0 0.0
    %1110 = vmatpush1.msra.mxu0 0.0
    %1111 = vmatprep.subr.mxu0 0.0
    %1112 = vmatpush1.msra.mxu0 0.0
    %1113 = vmatprep.subr.mxu0 0.0
    %1114 = vmatpush1.msra.mxu0 0.0
    %1115 = vmatprep.subr.mxu0 0.0
    %1116 = vmatpush1.msra.mxu0 0.0
    %1117 = vmatprep.subr.mxu0 0.0
    %1118 = vmatpush1.msra.mxu0 0.0
    %1119 = vmatprep.subr.mxu0 0.0
    %1120 = vmatpush1.msra.mxu0 0.0
    %1121 = vmatprep.subr.mxu0 0.0
    %1122 = vmatpush1.msra.mxu0 0.0
    %1123 = vmatprep.subr.mxu0 0.0
    %1124 = vmatpush1.msra.mxu0 0.0
    %1125 = vmatprep.subr.mxu0 0.0
    %1126 = vmatpush1.msra.mxu0 0.0
    %1127 = vmatprep.subr.mxu0 0.0
    %1128 = vmatpush1.msra.mxu0 0.0
    %1129 = vmatprep.subr.mxu0 0.0
    %1130 = vmatpush1.msra.mxu0 0.0
    %1131 = vmatprep.subr.mxu0 0.0
    %1132 = vmatpush1.msra.mxu0 0.0
    %1133 = vmatprep.subr.mxu0 0.0
    %1134 = vmatpush1.msra.mxu0 0.0
    %1135 = vmatprep.subr.mxu0 0.0
    %1136 = vmatpush1.msra.mxu0 0.0
    %1137 = vmatprep.subr.mxu0 0.0
    %1138 = vmatpush1.msra.mxu0 0.0
    %1139 = vmatprep.subr.mxu0 0.0
    %1140 = vmatpush1.msra.mxu0 0.0
    %1141 = vmatprep.subr.mxu0 0.0
    %1142 = vmatpush1.msra.mxu0 0.0
    %1143 = vmatprep.subr.mxu0 0.0
    %1144 = vmatpush1.msra.mxu0 0.0
    %1145 = vmatprep.subr.mxu0 0.0
    %1146 = vmatpush1.msra.mxu0 0.0
    %1147 = vmatprep.subr.mxu0 0.0
    %1148 = vmatpush1.msra.mxu0 0.0
    %1149 = vmatprep.subr.mxu0 0.0
    %1150 = vmatpush1.msra.mxu0 0.0
    %1151 = vmatprep.subr.mxu0 0.0
    %1152 = vmatpush1.msra.mxu0 0.0
    %1153 = vmatprep.mubr.f32.mxu0 0.0
    %1154 = vmatmul.mubr.f32.gmra.mrb[0].mxu0 %v1084
    %v1155 = vpop.f32.mrb[0].mxu0
    %v1156 = vadd.f32 %v1081, %v1155
    %v1157 = vpop.f32.mrb[0].mxu0
    %1158 = vmatprep.mubr.f32.mxu0 0.0
    %1159 = vmatmul.mubr.f32.gmra.mrb[0].mxu0 %v1087
    %v1160 = vpop.f32.mrb[0].mxu0
    %v1161 = vadd.f32 %v1081, %v1160
    %v1162 = vpop.f32.mrb[0].mxu0
    %1163 = vdwg.mxu0
    %s1164 = scalar_lea.vmem %s8, 32
    %v1165 = vld [vmem:[%s1164] sm:$0xff]
    %v1166 = vld [vmem:[%s1164 + $0x8] sm:$0xff]
    %v1167 = vld [vmem:[%s1164 + $0x10] sm:$0xff]
    %v1168 = vld [vmem:[%s1164 + $0x18] sm:$0xff]
    %s1169 = scalar_lea.vmem %s9, 1
    %v1170 = vld [vmem:[%s1169] sm:$0x1]
    %v1172 = vlaneseq
    %v1173 = vshrl.u32 %v1172, 7
    %v1174 = vsub.s32 0, %v1173
    %v1175 = vrot.slane %v1170, %v1174
    %1177 = vmatprep.subr.mxu0 0.0
    %1178 = vmatpush1.msra.mxu0 %v1165
    %1179 = vmatprep.subr.mxu0 0.0
    %1180 = vmatpush1.msra.mxu0 %v1166
    %1181 = vmatprep.subr.mxu0 0.0
    %1182 = vmatpush1.msra.mxu0 %v1167
    %1183 = vmatprep.subr.mxu0 0.0
    %1184 = vmatpush1.msra.mxu0 %v1168
    %1185 = vmatprep.subr.mxu0 0.0
    %1186 = vmatpush1.msra.mxu0 0.0
    %1187 = vmatprep.subr.mxu0 0.0
    %1188 = vmatpush1.msra.mxu0 0.0
    %1189 = vmatprep.subr.mxu0 0.0
    %1190 = vmatpush1.msra.mxu0 0.0
    %1191 = vmatprep.subr.mxu0 0.0
    %1192 = vmatpush1.msra.mxu0 0.0
    %1193 = vmatprep.subr.mxu0 0.0
    %1194 = vmatpush1.msra.mxu0 0.0
    %1195 = vmatprep.subr.mxu0 0.0
    %1196 = vmatpush1.msra.mxu0 0.0
    %1197 = vmatprep.subr.mxu0 0.0
    %1198 = vmatpush1.msra.mxu0 0.0
    %1199 = vmatprep.subr.mxu0 0.0
    %1200 = vmatpush1.msra.mxu0 0.0
    %1201 = vmatprep.subr.mxu0 0.0
    %1202 = vmatpush1.msra.mxu0 0.0
    %1203 = vmatprep.subr.mxu0 0.0
    %1204 = vmatpush1.msra.mxu0 0.0
    %1205 = vmatprep.subr.mxu0 0.0
    %1206 = vmatpush1.msra.mxu0 0.0
    %1207 = vmatprep.subr.mxu0 0.0
    %1208 = vmatpush1.msra.mxu0 0.0
    %1209 = vmatprep.subr.mxu0 0.0
    %1210 = vmatpush1.msra.mxu0 0.0
    %1211 = vmatprep.subr.mxu0 0.0
    %1212 = vmatpush1.msra.mxu0 0.0
    %1213 = vmatprep.subr.mxu0 0.0
    %1214 = vmatpush1.msra.mxu0 0.0
    %1215 = vmatprep.subr.mxu0 0.0
    %1216 = vmatpush1.msra.mxu0 0.0
    %1217 = vmatprep.subr.mxu0 0.0
    %1218 = vmatpush1.msra.mxu0 0.0
    %1219 = vmatprep.subr.mxu0 0.0
    %1220 = vmatpush1.msra.mxu0 0.0
    %1221 = vmatprep.subr.mxu0 0.0
    %1222 = vmatpush1.msra.mxu0 0.0
    %1223 = vmatprep.subr.mxu0 0.0
    %1224 = vmatpush1.msra.mxu0 0.0
    %1225 = vmatprep.subr.mxu0 0.0
    %1226 = vmatpush1.msra.mxu0 0.0
    %1227 = vmatprep.subr.mxu0 0.0
    %1228 = vmatpush1.msra.mxu0 0.0
    %1229 = vmatprep.subr.mxu0 0.0
    %1230 = vmatpush1.msra.mxu0 0.0
    %1231 = vmatprep.subr.mxu0 0.0
    %1232 = vmatpush1.msra.mxu0 0.0
    %1233 = vmatprep.subr.mxu0 0.0
    %1234 = vmatpush1.msra.mxu0 0.0
    %1235 = vmatprep.subr.mxu0 0.0
    %1236 = vmatpush1.msra.mxu0 0.0
    %1237 = vmatprep.subr.mxu0 0.0
    %1238 = vmatpush1.msra.mxu0 0.0
    %1239 = vmatprep.subr.mxu0 0.0
    %1240 = vmatpush1.msra.mxu0 0.0
    %1241 = vmatprep.mubr.f32.mxu0 0.0
    %1242 = vmatmul.mubr.f32.gmra.mrb[0].mxu0 %v1084
    %v1243 = vpop.f32.mrb[0].mxu0
    %v1244 = vadd.f32 %v1175, %v1243
    %v1245 = vpop.f32.mrb[0].mxu0
    %1246 = vmatprep.mubr.f32.mxu0 0.0
    %1247 = vmatmul.mubr.f32.gmra.mrb[0].mxu0 %v1087
    %v1248 = vpop.f32.mrb[0].mxu0
    %v1249 = vadd.f32 %v1175, %v1248
    %v1250 = vpop.f32.mrb[0].mxu0
    %1251 = vdwg.mxu0
    %s1252 = scalar_lea.vmem %s10, 32
    %v1253 = vld [vmem:[%s1252] sm:$0xff]
    %v1254 = vld [vmem:[%s1252 + $0x8] sm:$0xff]
    %v1255 = vld [vmem:[%s1252 + $0x10] sm:$0xff]
    %v1256 = vld [vmem:[%s1252 + $0x18] sm:$0xff]
    %s1257 = scalar_lea.vmem %s11, 1
    %v1258 = vld [vmem:[%s1257] sm:$0x1]
    %v1260 = vlaneseq
    %v1261 = vshrl.u32 %v1260, 7
    %v1262 = vsub.s32 0, %v1261
    %v1263 = vrot.slane %v1258, %v1262
    %1265 = vmatprep.subr.mxu0 0.0
    %1266 = vmatpush1.msra.mxu0 %v1253
    %1267 = vmatprep.subr.mxu0 0.0
    %1268 = vmatpush1.msra.mxu0 %v1254
    %1269 = vmatprep.subr.mxu0 0.0
    %1270 = vmatpush1.msra.mxu0 %v1255
    %1271 = vmatprep.subr.mxu0 0.0
    %1272 = vmatpush1.msra.mxu0 %v1256
    %1273 = vmatprep.subr.mxu0 0.0
    %1274 = vmatpush1.msra.mxu0 0.0
    %1275 = vmatprep.subr.mxu0 0.0
    %1276 = vmatpush1.msra.mxu0 0.0
    %1277 = vmatprep.subr.mxu0 0.0
    %1278 = vmatpush1.msra.mxu0 0.0
    %1279 = vmatprep.subr.mxu0 0.0
    %1280 = vmatpush1.msra.mxu0 0.0
    %1281 = vmatprep.subr.mxu0 0.0
    %1282 = vmatpush1.msra.mxu0 0.0
    %1283 = vmatprep.subr.mxu0 0.0
    %1284 = vmatpush1.msra.mxu0 0.0
    %1285 = vmatprep.subr.mxu0 0.0
    %1286 = vmatpush1.msra.mxu0 0.0
    %1287 = vmatprep.subr.mxu0 0.0
    %1288 = vmatpush1.msra.mxu0 0.0
    %1289 = vmatprep.subr.mxu0 0.0
    %1290 = vmatpush1.msra.mxu0 0.0
    %1291 = vmatprep.subr.mxu0 0.0
    %1292 = vmatpush1.msra.mxu0 0.0
    %1293 = vmatprep.subr.mxu0 0.0
    %1294 = vmatpush1.msra.mxu0 0.0
    %1295 = vmatprep.subr.mxu0 0.0
    %1296 = vmatpush1.msra.mxu0 0.0
    %1297 = vmatprep.subr.mxu0 0.0
    %1298 = vmatpush1.msra.mxu0 0.0
    %1299 = vmatprep.subr.mxu0 0.0
    %1300 = vmatpush1.msra.mxu0 0.0
    %1301 = vmatprep.subr.mxu0 0.0
    %1302 = vmatpush1.msra.mxu0 0.0
    %1303 = vmatprep.subr.mxu0 0.0
    %1304 = vmatpush1.msra.mxu0 0.0
    %1305 = vmatprep.subr.mxu0 0.0
    %1306 = vmatpush1.msra.mxu0 0.0
    %1307 = vmatprep.subr.mxu0 0.0
    %1308 = vmatpush1.msra.mxu0 0.0
    %1309 = vmatprep.subr.mxu0 0.0
    %1310 = vmatpush1.msra.mxu0 0.0
    %1311 = vmatprep.subr.mxu0 0.0
    %1312 = vmatpush1.msra.mxu0 0.0
    %1313 = vmatprep.subr.mxu0 0.0
    %1314 = vmatpush1.msra.mxu0 0.0
    %1315 = vmatprep.subr.mxu0 0.0
    %1316 = vmatpush1.msra.mxu0 0.0
    %1317 = vmatprep.subr.mxu0 0.0
    %1318 = vmatpush1.msra.mxu0 0.0
    %1319 = vmatprep.subr.mxu0 0.0
    %1320 = vmatpush1.msra.mxu0 0.0
    %1321 = vmatprep.subr.mxu0 0.0
    %1322 = vmatpush1.msra.mxu0 0.0
    %1323 = vmatprep.subr.mxu0 0.0
    %1324 = vmatpush1.msra.mxu0 0.0
    %1325 = vmatprep.subr.mxu0 0.0
    %1326 = vmatpush1.msra.mxu0 0.0
    %1327 = vmatprep.subr.mxu0 0.0
    %1328 = vmatpush1.msra.mxu0 0.0
    %1329 = vmatprep.mubr.f32.mxu0 0.0
    %1330 = vmatmul.mubr.f32.gmra.mrb[0].mxu0 %v1084
    %v1331 = vpop.f32.mrb[0].mxu0
    %v1332 = vadd.f32 %v1263, %v1331
    %v1333 = vpop.f32.mrb[0].mxu0
    %1334 = vmatprep.mubr.f32.mxu0 0.0
    %1335 = vmatmul.mubr.f32.gmra.mrb[0].mxu0 %v1087
    %v1336 = vpop.f32.mrb[0].mxu0
    %v1337 = vadd.f32 %v1263, %v1336
    %v1338 = vpop.f32.mrb[0].mxu0
    %1339 = vdwg.mxu0
    %v1340 = vmul.f32 %v1156, %v1244
    %v1341 = vmul.f32 %v1156, %v1249
    %v1342 = vmul.f32 %v1161, %v1244
    %v1343 = vmul.f32 %v1161, %v1249
    %v1345 = vsel %vm208, %v1340, 0
    %v1348 = vsel %vm208, %v1341, 0
    %v1351 = vsel %vm208, %v1342, 0
    %v1354 = vsel %vm208, %v1343, 0
    %1356 = vmatprep.subr.mxu0 0.0
    %1357 = vmatpush1.msra.mxu0 %v72
    %1358 = vmatprep.subr.mxu0 0.0
    %1359 = vmatpush1.msra.mxu0 %v73
    %1360 = vmatprep.subr.mxu0 0.0
    %1361 = vmatpush1.msra.mxu0 %v74
    %1362 = vmatprep.subr.mxu0 0.0
    %1363 = vmatpush1.msra.mxu0 %v75
    %1364 = vmatprep.subr.mxu0 0.0
    %1365 = vmatpush1.msra.mxu0 0.0
    %1366 = vmatprep.subr.mxu0 0.0
    %1367 = vmatpush1.msra.mxu0 0.0
    %1368 = vmatprep.subr.mxu0 0.0
    %1369 = vmatpush1.msra.mxu0 0.0
    %1370 = vmatprep.subr.mxu0 0.0
    %1371 = vmatpush1.msra.mxu0 0.0
    %1372 = vmatprep.subr.mxu0 0.0
    %1373 = vmatpush1.msra.mxu0 0.0
    %1374 = vmatprep.subr.mxu0 0.0
    %1375 = vmatpush1.msra.mxu0 0.0
    %1376 = vmatprep.subr.mxu0 0.0
    %1377 = vmatpush1.msra.mxu0 0.0
    %1378 = vmatprep.subr.mxu0 0.0
    %1379 = vmatpush1.msra.mxu0 0.0
    %1380 = vmatprep.subr.mxu0 0.0
    %1381 = vmatpush1.msra.mxu0 0.0
    %1382 = vmatprep.subr.mxu0 0.0
    %1383 = vmatpush1.msra.mxu0 0.0
    %1384 = vmatprep.subr.mxu0 0.0
    %1385 = vmatpush1.msra.mxu0 0.0
    %1386 = vmatprep.subr.mxu0 0.0
    %1387 = vmatpush1.msra.mxu0 0.0
    %1388 = vmatprep.subr.mxu0 0.0
    %1389 = vmatpush1.msra.mxu0 0.0
    %1390 = vmatprep.subr.mxu0 0.0
    %1391 = vmatpush1.msra.mxu0 0.0
    %1392 = vmatprep.subr.mxu0 0.0
    %1393 = vmatpush1.msra.mxu0 0.0
    %1394 = vmatprep.subr.mxu0 0.0
    %1395 = vmatpush1.msra.mxu0 0.0
    %1396 = vmatprep.subr.mxu0 0.0
    %1397 = vmatpush1.msra.mxu0 0.0
    %1398 = vmatprep.subr.mxu0 0.0
    %1399 = vmatpush1.msra.mxu0 0.0
    %1400 = vmatprep.subr.mxu0 0.0
    %1401 = vmatpush1.msra.mxu0 0.0
    %1402 = vmatprep.subr.mxu0 0.0
    %1403 = vmatpush1.msra.mxu0 0.0
    %1404 = vmatprep.subr.mxu0 0.0
    %1405 = vmatpush1.msra.mxu0 0.0
    %1406 = vmatprep.subr.mxu0 0.0
    %1407 = vmatpush1.msra.mxu0 0.0
    %1408 = vmatprep.subr.mxu0 0.0
    %1409 = vmatpush1.msra.mxu0 0.0
    %1410 = vmatprep.subr.mxu0 0.0
    %1411 = vmatpush1.msra.mxu0 0.0
    %1412 = vmatprep.subr.mxu0 0.0
    %1413 = vmatpush1.msra.mxu0 0.0
    %1414 = vmatprep.subr.mxu0 0.0
    %1415 = vmatpush1.msra.mxu0 0.0
    %1416 = vmatprep.subr.mxu0 0.0
    %1417 = vmatpush1.msra.mxu0 0.0
    %1418 = vmatprep.subr.mxu0 0.0
    %1419 = vmatpush1.msra.mxu0 0.0
    %1420 = vmatprep.mubr.f32.mxu0 0.0
    %1421 = vmatmul.mubr.f32.gmra.mrb[0].mxu0 %v1345
    %v1422 = vpop.f32.mrb[0].mxu0
    %v1423 = vadd.f32 0.0, %v1422
    %v1424 = vpop.f32.mrb[0].mxu0
    %1425 = vmatprep.mubr.f32.mxu0 0.0
    %1426 = vmatmul.mubr.f32.gmra.mrb[0].mxu0 %v1348
    %v1427 = vpop.f32.mrb[0].mxu0
    %v1428 = vadd.f32 0.0, %v1427
    %v1429 = vpop.f32.mrb[0].mxu0
    %1430 = vmatprep.mubr.f32.mxu0 0.0
    %1431 = vmatmul.mubr.f32.gmra.mrb[0].mxu0 %v1351
    %v1432 = vpop.f32.mrb[0].mxu0
    %v1433 = vadd.f32 0.0, %v1432
    %v1434 = vpop.f32.mrb[0].mxu0
    %1435 = vmatprep.mubr.f32.mxu0 0.0
    %1436 = vmatmul.mubr.f32.gmra.mrb[0].mxu0 %v1354
    %v1437 = vpop.f32.mrb[0].mxu0
    %v1438 = vadd.f32 0.0, %v1437
    %v1439 = vpop.f32.mrb[0].mxu0
    %1440 = vdwg.mxu0
    %v1441 = vmax.f32 %v1423, %v1428
    %v1442 = vmax.f32 %v1433, %v1438
    %v1443 = vsub.f32 %v1423, %v1441
    %v1444 = vsub.f32 %v1428, %v1441
    %v1445 = vsub.f32 %v1433, %v1442
    %v1446 = vsub.f32 %v1438, %v1442
    %v1447 = vmul.f32 %v1443, 1.442695
    %v1448 = vpow.pop %v1447
    %v1449 = vmul.f32 %v1444, 1.442695
    %v1450 = vpow.pop %v1449
    %v1451 = vmul.f32 %v1445, 1.442695
    %v1452 = vpow.pop %v1451
    %v1453 = vmul.f32 %v1446, 1.442695
    %v1454 = vpow.pop %v1453
    %v1455 = vadd.f32 %v1448, %v1450
    %v1456 = vadd.f32 %v1452, %v1454
    %v1457 = vrcp.pop %v1455
    %v1458 = vrcp.pop %v1456
    %v1459 = vmul.f32 %v1448, %v1457
    %v1460 = vmul.f32 %v1450, %v1457
    %v1461 = vmul.f32 %v1452, %v1458
    %v1462 = vmul.f32 %v1454, %v1458
    %v1464 = vsel %vm585, %v1459, 0
    %v1467 = vsel %vm585, %v1460, 0
    %v1470 = vsel %vm585, %v1461, 0
    %v1473 = vsel %vm585, %v1462, 0
    %1475 = vmatprep.subr.mxu0 0.0
    %1476 = vmatpush1.msra.mxu0 %v600
    %1477 = vmatprep.subr.mxu0 0.0
    %1478 = vmatpush1.msra.mxu0 0.0
    %1479 = vmatprep.subr.mxu0 0.0
    %1480 = vmatpush1.msra.mxu0 0.0
    %1481 = vmatprep.subr.mxu0 0.0
    %1482 = vmatpush1.msra.mxu0 0.0
    %1483 = vmatprep.subr.mxu0 0.0
    %1484 = vmatpush1.msra.mxu0 0.0
    %1485 = vmatprep.subr.mxu0 0.0
    %1486 = vmatpush1.msra.mxu0 0.0
    %1487 = vmatprep.subr.mxu0 0.0
    %1488 = vmatpush1.msra.mxu0 0.0
    %1489 = vmatprep.subr.mxu0 0.0
    %1490 = vmatpush1.msra.mxu0 0.0
    %1491 = vmatprep.subr.mxu0 0.0
    %1492 = vmatpush1.msra.mxu0 0.0
    %1493 = vmatprep.subr.mxu0 0.0
    %1494 = vmatpush1.msra.mxu0 0.0
    %1495 = vmatprep.subr.mxu0 0.0
    %1496 = vmatpush1.msra.mxu0 0.0
    %1497 = vmatprep.subr.mxu0 0.0
    %1498 = vmatpush1.msra.mxu0 0.0
    %1499 = vmatprep.subr.mxu0 0.0
    %1500 = vmatpush1.msra.mxu0 0.0
    %1501 = vmatprep.subr.mxu0 0.0
    %1502 = vmatpush1.msra.mxu0 0.0
    %1503 = vmatprep.subr.mxu0 0.0
    %1504 = vmatpush1.msra.mxu0 0.0
    %1505 = vmatprep.subr.mxu0 0.0
    %1506 = vmatpush1.msra.mxu0 0.0
    %1507 = vmatprep.subr.mxu0 0.0
    %1508 = vmatpush1.msra.mxu0 0.0
    %1509 = vmatprep.subr.mxu0 0.0
    %1510 = vmatpush1.msra.mxu0 0.0
    %1511 = vmatprep.subr.mxu0 0.0
    %1512 = vmatpush1.msra.mxu0 0.0
    %1513 = vmatprep.subr.mxu0 0.0
    %1514 = vmatpush1.msra.mxu0 0.0
    %1515 = vmatprep.subr.mxu0 0.0
    %1516 = vmatpush1.msra.mxu0 0.0
    %1517 = vmatprep.subr.mxu0 0.0
    %1518 = vmatpush1.msra.mxu0 0.0
    %1519 = vmatprep.subr.mxu0 0.0
    %1520 = vmatpush1.msra.mxu0 0.0
    %1521 = vmatprep.subr.mxu0 0.0
    %1522 = vmatpush1.msra.mxu0 0.0
    %1523 = vmatprep.subr.mxu0 0.0
    %1524 = vmatpush1.msra.mxu0 0.0
    %1525 = vmatprep.subr.mxu0 0.0
    %1526 = vmatpush1.msra.mxu0 0.0
    %1527 = vmatprep.subr.mxu0 0.0
    %1528 = vmatpush1.msra.mxu0 0.0
    %1529 = vmatprep.subr.mxu0 0.0
    %1530 = vmatpush1.msra.mxu0 0.0
    %1531 = vmatprep.subr.mxu0 0.0
    %1532 = vmatpush1.msra.mxu0 0.0
    %1533 = vmatprep.subr.mxu0 0.0
    %1534 = vmatpush1.msra.mxu0 0.0
    %1535 = vmatprep.subr.mxu0 0.0
    %1536 = vmatpush1.msra.mxu0 0.0
    %1537 = vmatprep.subr.mxu0 0.0
    %1538 = vmatpush1.msra.mxu0 0.0
    %1539 = vmatprep.mubr.f32.mxu0 0.0
    %1540 = vmatmul.mubr.f32.gmra.mrb[0].mxu0 %v1464
    %v1541 = vpop.f32.mrb[0].mxu0
    %v1542 = vadd.f32 0.0, %v1541
    %v1543 = vpop.f32.mrb[0].mxu0
    %1544 = vmatprep.mubr.f32.mxu0 0.0
    %1545 = vmatmul.mubr.f32.gmra.mrb[0].mxu0 %v1467
    %v1546 = vpop.f32.mrb[0].mxu0
    %v1547 = vadd.f32 0.0, %v1546
    %v1548 = vpop.f32.mrb[0].mxu0
    %1549 = vmatprep.mubr.f32.mxu0 0.0
    %1550 = vmatmul.mubr.f32.gmra.mrb[0].mxu0 %v1470
    %v1551 = vpop.f32.mrb[0].mxu0
    %v1552 = vadd.f32 0.0, %v1551
    %v1553 = vpop.f32.mrb[0].mxu0
    %1554 = vmatprep.mubr.f32.mxu0 0.0
    %1555 = vmatmul.mubr.f32.gmra.mrb[0].mxu0 %v1473
    %v1556 = vpop.f32.mrb[0].mxu0
    %v1557 = vadd.f32 0.0, %v1556
    %v1558 = vpop.f32.mrb[0].mxu0
    %1559 = vdwg.mxu0
    %v1560 = vmul.f32 %v1542, %v1332
    %v1561 = vmul.f32 %v1547, %v1337
    %v1562 = vmul.f32 %v1552, %v1332
    %v1563 = vmul.f32 %v1557, %v1337
    %v1564 = vadd.f32 %v1560, %v1561
    %v1565 = vadd.f32 %v1562, %v1563
    %s1566 = scalar_lea.vmem %s12, 32
    %v1567 = vld [vmem:[%s1566] sm:$0xff]
    %v1568 = vld [vmem:[%s1566 + $0x8] sm:$0xff]
    %v1569 = vld [vmem:[%s1566 + $0x10] sm:$0xff]
    %v1570 = vld [vmem:[%s1566 + $0x18] sm:$0xff]
    %s1571 = scalar_lea.vmem %s13, 1
    %v1572 = vld [vmem:[%s1571] sm:$0x1]
    %v1574 = vlaneseq
    %v1575 = vshrl.u32 %v1574, 7
    %v1576 = vsub.s32 0, %v1575
    %v1577 = vrot.slane %v1572, %v1576
    %v1580 = vsel %vm208, %v1564, 0
    %v1583 = vsel %vm208, %v1565, 0
    %1585 = vmatprep.subr.mxu0 0.0
    %1586 = vmatpush1.msra.mxu0 %v1567
    %1587 = vmatprep.subr.mxu0 0.0
    %1588 = vmatpush1.msra.mxu0 %v1568
    %1589 = vmatprep.subr.mxu0 0.0
    %1590 = vmatpush1.msra.mxu0 %v1569
    %1591 = vmatprep.subr.mxu0 0.0
    %1592 = vmatpush1.msra.mxu0 %v1570
    %1593 = vmatprep.subr.mxu0 0.0
    %1594 = vmatpush1.msra.mxu0 0.0
    %1595 = vmatprep.subr.mxu0 0.0
    %1596 = vmatpush1.msra.mxu0 0.0
    %1597 = vmatprep.subr.mxu0 0.0
    %1598 = vmatpush1.msra.mxu0 0.0
    %1599 = vmatprep.subr.mxu0 0.0
    %1600 = vmatpush1.msra.mxu0 0.0
    %1601 = vmatprep.subr.mxu0 0.0
    %1602 = vmatpush1.msra.mxu0 0.0
    %1603 = vmatprep.subr.mxu0 0.0
    %1604 = vmatpush1.msra.mxu0 0.0
    %1605 = vmatprep.subr.mxu0 0.0
    %1606 = vmatpush1.msra.mxu0 0.0
    %1607 = vmatprep.subr.mxu0 0.0
    %1608 = vmatpush1.msra.mxu0 0.0
    %1609 = vmatprep.subr.mxu0 0.0
    %1610 = vmatpush1.msra.mxu0 0.0
    %1611 = vmatprep.subr.mxu0 0.0
    %1612 = vmatpush1.msra.mxu0 0.0
    %1613 = vmatprep.subr.mxu0 0.0
    %1614 = vmatpush1.msra.mxu0 0.0
    %1615 = vmatprep.subr.mxu0 0.0
    %1616 = vmatpush1.msra.mxu0 0.0
    %1617 = vmatprep.subr.mxu0 0.0
    %1618 = vmatpush1.msra.mxu0 0.0
    %1619 = vmatprep.subr.mxu0 0.0
    %1620 = vmatpush1.msra.mxu0 0.0
    %1621 = vmatprep.subr.mxu0 0.0
    %1622 = vmatpush1.msra.mxu0 0.0
    %1623 = vmatprep.subr.mxu0 0.0
    %1624 = vmatpush1.msra.mxu0 0.0
    %1625 = vmatprep.subr.mxu0 0.0
    %1626 = vmatpush1.msra.mxu0 0.0
    %1627 = vmatprep.subr.mxu0 0.0
    %1628 = vmatpush1.msra.mxu0 0.0
    %1629 = vmatprep.subr.mxu0 0.0
    %1630 = vmatpush1.msra.mxu0 0.0
    %1631 = vmatprep.subr.mxu0 0.0
    %1632 = vmatpush1.msra.mxu0 0.0
    %1633 = vmatprep.subr.mxu0 0.0
    %1634 = vmatpush1.msra.mxu0 0.0
    %1635 = vmatprep.subr.mxu0 0.0
    %1636 = vmatpush1.msra.mxu0 0.0
    %1637 = vmatprep.subr.mxu0 0.0
    %1638 = vmatpush1.msra.mxu0 0.0
    %1639 = vmatprep.subr.mxu0 0.0
    %1640 = vmatpush1.msra.mxu0 0.0
    %1641 = vmatprep.subr.mxu0 0.0
    %1642 = vmatpush1.msra.mxu0 0.0
    %1643 = vmatprep.subr.mxu0 0.0
    %1644 = vmatpush1.msra.mxu0 0.0
    %1645 = vmatprep.subr.mxu0 0.0
    %1646 = vmatpush1.msra.mxu0 0.0
    %1647 = vmatprep.subr.mxu0 0.0
    %1648 = vmatpush1.msra.mxu0 0.0
    %1649 = vmatprep.mubr.f32.mxu0 0.0
    %1650 = vmatmul.mubr.f32.gmra.mrb[0].mxu0 %v1580
    %v1651 = vpop.f32.mrb[0].mxu0
    %v1652 = vadd.f32 %v1577, %v1651
    %v1653 = vpop.f32.mrb[0].mxu0
    %1654 = vmatprep.mubr.f32.mxu0 0.0
    %1655 = vmatmul.mubr.f32.gmra.mrb[0].mxu0 %v1583
    %v1656 = vpop.f32.mrb[0].mxu0
    %v1657 = vadd.f32 %v1577, %v1656
    %v1658 = vpop.f32.mrb[0].mxu0
    %1659 = vdwg.mxu0
    %v1660 = vadd.f32 %v1068, %v1652
    %v1661 = vadd.f32 %v1069, %v1657
    %s1662 = scalar_lea.vmem %s14, 1
    %v1663 = vld [vmem:[%s1662] sm:$0x1]
    %s1664 = scalar_lea.vmem %s15, 1
    %v1665 = vld [vmem:[%s1664] sm:$0x1]
    %v1666 = vsel %vm208, %v1660, 0.0
    %1667 = vadd.xlane.f32.xlu0 %v1666
    %v1668 = vpop.xlane.xlu0 %1667
    %v1669 = vsel %vm208, %v1661, 0.0
    %1670 = vadd.xlane.f32.xlu0 %v1669
    %v1671 = vpop.xlane.xlu0 %1670
    %v1672 = vmul.f32 %v1668, %v795
    %v1673 = vmul.f32 %v1671, %v795
    %v1674 = vsub.f32 %v1660, %v1672
    %v1675 = vsub.f32 %v1661, %v1673
    %v1676 = vmul.f32 %v1674, %v1674
    %v1677 = vmul.f32 %v1675, %v1675
    %v1678 = vsel %vm208, %v1676, 0.0
    %1679 = vadd.xlane.f32.xlu0 %v1678
    %v1680 = vpop.xlane.xlu0 %1679
    %v1681 = vsel %vm208, %v1677, 0.0
    %1682 = vadd.xlane.f32.xlu0 %v1681
    %v1683 = vpop.xlane.xlu0 %1682
    %v1684 = vmul.f32 %v1680, %v795
    %v1685 = vmul.f32 %v1683, %v795
    %v1686 = vadd.f32 %v1684, 1e-05
    %v1687 = vadd.f32 %v1685, 1e-05
    %v1688 = vrsqrt.pop %v1686
    %v1689 = vrsqrt.pop %v1687
    %v1690 = vmul.f32 %v1674, %v1688
    %v1691 = vmul.f32 %v1675, %v1689
    %v1693 = vlaneseq
    %v1694 = vshrl.u32 %v1693, 7
    %v1695 = vsub.s32 0, %v1694
    %v1696 = vrot.slane %v1663, %v1695
    %v1698 = vmul.f32 %v1690, %v1696
    %v1699 = vmul.f32 %v1691, %v1696
    %v1701 = vlaneseq
    %v1702 = vshrl.u32 %v1701, 7
    %v1703 = vsub.s32 0, %v1702
    %v1704 = vrot.slane %v1665, %v1703
    %v1706 = vadd.f32 %v1698, %v1704
    %v1707 = vadd.f32 %v1699, %v1704
    %s1708 = scalar_lea.vmem %s16, 32
    %v1709 = vld [vmem:[%s1708] sm:$0xff]
    %v1710 = vld [vmem:[%s1708 + $0x8] sm:$0xff]
    %v1711 = vld [vmem:[%s1708 + $0x10] sm:$0xff]
    %v1712 = vld [vmem:[%s1708 + $0x18] sm:$0xff]
    %s1713 = scalar_lea.vmem %s17, 1
    %v1714 = vld [vmem:[%s1713] sm:$0x1]
    %v1716 = vlaneseq
    %v1717 = vshrl.u32 %v1716, 7
    %v1718 = vsub.s32 0, %v1717
    %v1719 = vrot.slane %v1714, %v1718
    %v1722 = vsel %vm208, %v1706, 0
    %v1725 = vsel %vm208, %v1707, 0
    %1727 = vmatprep.subr.mxu0 0.0
    %1728 = vmatpush1.msra.mxu0 %v1709
    %1729 = vmatprep.subr.mxu0 0.0
    %1730 = vmatpush1.msra.mxu0 %v1710
    %1731 = vmatprep.subr.mxu0 0.0
    %1732 = vmatpush1.msra.mxu0 %v1711
    %1733 = vmatprep.subr.mxu0 0.0
    %1734 = vmatpush1.msra.mxu0 %v1712
    %1735 = vmatprep.subr.mxu0 0.0
    %1736 = vmatpush1.msra.mxu0 0.0
    %1737 = vmatprep.subr.mxu0 0.0
    %1738 = vmatpush1.msra.mxu0 0.0
    %1739 = vmatprep.subr.mxu0 0.0
    %1740 = vmatpush1.msra.mxu0 0.0
    %1741 = vmatprep.subr.mxu0 0.0
    %1742 = vmatpush1.msra.mxu0 0.0
    %1743 = vmatprep.subr.mxu0 0.0
    %1744 = vmatpush1.msra.mxu0 0.0
    %1745 = vmatprep.subr.mxu0 0.0
    %1746 = vmatpush1.msra.mxu0 0.0
    %1747 = vmatprep.subr.mxu0 0.0
    %1748 = vmatpush1.msra.mxu0 0.0
    %1749 = vmatprep.subr.mxu0 0.0
    %1750 = vmatpush1.msra.mxu0 0.0
    %1751 = vmatprep.subr.mxu0 0.0
    %1752 = vmatpush1.msra.mxu0 0.0
    %1753 = vmatprep.subr.mxu0 0.0
    %1754 = vmatpush1.msra.mxu0 0.0
    %1755 = vmatprep.subr.mxu0 0.0
    %1756 = vmatpush1.msra.mxu0 0.0
    %1757 = vmatprep.subr.mxu0 0.0
    %1758 = vmatpush1.msra.mxu0 0.0
    %1759 = vmatprep.subr.mxu0 0.0
    %1760 = vmatpush1.msra.mxu0 0.0
    %1761 = vmatprep.subr.mxu0 0.0
    %1762 = vmatpush1.msra.mxu0 0.0
    %1763 = vmatprep.subr.mxu0 0.0
    %1764 = vmatpush1.msra.mxu0 0.0
    %1765 = vmatprep.subr.mxu0 0.0
    %1766 = vmatpush1.msra.mxu0 0.0
    %1767 = vmatprep.subr.mxu0 0.0
    %1768 = vmatpush1.msra.mxu0 0.0
    %1769 = vmatprep.subr.mxu0 0.0
    %1770 = vmatpush1.msra.mxu0 0.0
    %1771 = vmatprep.subr.mxu0 0.0
    %1772 = vmatpush1.msra.mxu0 0.0
    %1773 = vmatprep.subr.mxu0 0.0
    %1774 = vmatpush1.msra.mxu0 0.0
    %1775 = vmatprep.subr.mxu0 0.0
    %1776 = vmatpush1.msra.mxu0 0.0
    %1777 = vmatprep.subr.mxu0 0.0
    %1778 = vmatpush1.msra.mxu0 0.0
    %1779 = vmatprep.subr.mxu0 0.0
    %1780 = vmatpush1.msra.mxu0 0.0
    %1781 = vmatprep.subr.mxu0 0.0
    %1782 = vmatpush1.msra.mxu0 0.0
    %1783 = vmatprep.subr.mxu0 0.0
    %1784 = vmatpush1.msra.mxu0 0.0
    %1785 = vmatprep.subr.mxu0 0.0
    %1786 = vmatpush1.msra.mxu0 0.0
    %1787 = vmatprep.subr.mxu0 0.0
    %1788 = vmatpush1.msra.mxu0 0.0
    %1789 = vmatprep.subr.mxu0 0.0
    %1790 = vmatpush1.msra.mxu0 0.0
    %1791 = vmatprep.mubr.f32.mxu0 0.0
    %1792 = vmatmul.mubr.f32.gmra.mrb[0].mxu0 %v1722
    %v1793 = vpop.f32.mrb[0].mxu0
    %v1794 = vadd.f32 %v1719, %v1793
    %v1795 = vpop.f32.mrb[0].mxu0
    %1796 = vmatprep.mubr.f32.mxu0 0.0
    %1797 = vmatmul.mubr.f32.gmra.mrb[0].mxu0 %v1725
    %v1798 = vpop.f32.mrb[0].mxu0
    %v1799 = vadd.f32 %v1719, %v1798
    %v1800 = vpop.f32.mrb[0].mxu0
    %1801 = vdwg.mxu0
    %v1802 = vmax.f32 %v1794, 0.0
    %v1803 = vmax.f32 %v1799, 0.0
    %s1804 = scalar_lea.vmem %s18, 128
    %v1805 = vld [vmem:[%s1804] sm:$0xff]
    %v1806 = vld [vmem:[%s1804 + $0x8] sm:$0xff]
    %v1807 = vld [vmem:[%s1804 + $0x10] sm:$0xff]
    %v1808 = vld [vmem:[%s1804 + $0x18] sm:$0xff]
    %v1809 = vld [vmem:[%s1804 + $0x20] sm:$0xff]
    %v1810 = vld [vmem:[%s1804 + $0x28] sm:$0xff]
    %v1811 = vld [vmem:[%s1804 + $0x30] sm:$0xff]
    %v1812 = vld [vmem:[%s1804 + $0x38] sm:$0xff]
    %v1813 = vld [vmem:[%s1804 + $0x40] sm:$0xff]
    %v1814 = vld [vmem:[%s1804 + $0x48] sm:$0xff]
    %v1815 = vld [vmem:[%s1804 + $0x50] sm:$0xff]
    %v1816 = vld [vmem:[%s1804 + $0x58] sm:$0xff]
    %v1817 = vld [vmem:[%s1804 + $0x60] sm:$0xff]
    %v1818 = vld [vmem:[%s1804 + $0x68] sm:$0xff]
    %v1819 = vld [vmem:[%s1804 + $0x70] sm:$0xff]
    %v1820 = vld [vmem:[%s1804 + $0x78] sm:$0xff]
    %s1821 = scalar_lea.vmem %s19, 1
    %v1822 = vld [vmem:[%s1821] sm:$0x1]
    %v1824 = vlaneseq
    %v1825 = vshrl.u32 %v1824, 7
    %v1826 = vsub.s32 0, %v1825
    %v1827 = vrot.slane %v1822, %v1826
    %1829 = vmatprep.subr.mxu0 0.0
    %1830 = vmatpush1.msra.mxu0 %v1805
    %1831 = vmatprep.subr.mxu0 0.0
    %1832 = vmatpush1.msra.mxu0 %v1806
    %1833 = vmatprep.subr.mxu0 0.0
    %1834 = vmatpush1.msra.mxu0 %v1807
    %1835 = vmatprep.subr.mxu0 0.0
    %1836 = vmatpush1.msra.mxu0 %v1808
    %1837 = vmatprep.subr.mxu0 0.0
    %1838 = vmatpush1.msra.mxu0 %v1809
    %1839 = vmatprep.subr.mxu0 0.0
    %1840 = vmatpush1.msra.mxu0 %v1810
    %1841 = vmatprep.subr.mxu0 0.0
    %1842 = vmatpush1.msra.mxu0 %v1811
    %1843 = vmatprep.subr.mxu0 0.0
    %1844 = vmatpush1.msra.mxu0 %v1812
    %1845 = vmatprep.subr.mxu0 0.0
    %1846 = vmatpush1.msra.mxu0 %v1813
    %1847 = vmatprep.subr.mxu0 0.0
    %1848 = vmatpush1.msra.mxu0 %v1814
    %1849 = vmatprep.subr.mxu0 0.0
    %1850 = vmatpush1.msra.mxu0 %v1815
    %1851 = vmatprep.subr.mxu0 0.0
    %1852 = vmatpush1.msra.mxu0 %v1816
    %1853 = vmatprep.subr.mxu0 0.0
    %1854 = vmatpush1.msra.mxu0 %v1817
    %1855 = vmatprep.subr.mxu0 0.0
    %1856 = vmatpush1.msra.mxu0 %v1818
    %1857 = vmatprep.subr.mxu0 0.0
    %1858 = vmatpush1.msra.mxu0 %v1819
    %1859 = vmatprep.subr.mxu0 0.0
    %1860 = vmatpush1.msra.mxu0 %v1820
    %1861 = vmatprep.subr.mxu0 0.0
    %1862 = vmatpush1.msra.mxu0 0.0
    %1863 = vmatprep.subr.mxu0 0.0
    %1864 = vmatpush1.msra.mxu0 0.0
    %1865 = vmatprep.subr.mxu0 0.0
    %1866 = vmatpush1.msra.mxu0 0.0
    %1867 = vmatprep.subr.mxu0 0.0
    %1868 = vmatpush1.msra.mxu0 0.0
    %1869 = vmatprep.subr.mxu0 0.0
    %1870 = vmatpush1.msra.mxu0 0.0
    %1871 = vmatprep.subr.mxu0 0.0
    %1872 = vmatpush1.msra.mxu0 0.0
    %1873 = vmatprep.subr.mxu0 0.0
    %1874 = vmatpush1.msra.mxu0 0.0
    %1875 = vmatprep.subr.mxu0 0.0
    %1876 = vmatpush1.msra.mxu0 0.0
    %1877 = vmatprep.subr.mxu0 0.0
    %1878 = vmatpush1.msra.mxu0 0.0
    %1879 = vmatprep.subr.mxu0 0.0
    %1880 = vmatpush1.msra.mxu0 0.0
    %1881 = vmatprep.subr.mxu0 0.0
    %1882 = vmatpush1.msra.mxu0 0.0
    %1883 = vmatprep.subr.mxu0 0.0
    %1884 = vmatpush1.msra.mxu0 0.0
    %1885 = vmatprep.subr.mxu0 0.0
    %1886 = vmatpush1.msra.mxu0 0.0
    %1887 = vmatprep.subr.mxu0 0.0
    %1888 = vmatpush1.msra.mxu0 0.0
    %1889 = vmatprep.subr.mxu0 0.0
    %1890 = vmatpush1.msra.mxu0 0.0
    %1891 = vmatprep.subr.mxu0 0.0
    %1892 = vmatpush1.msra.mxu0 0.0
    %1893 = vmatprep.mubr.f32.mxu0 0.0
    %1894 = vmatmul.mubr.f32.gmra.mrb[0].mxu0 %v1802
    %v1895 = vpop.f32.mrb[0].mxu0
    %v1896 = vadd.f32 %v1827, %v1895
    %v1897 = vpop.f32.mrb[0].mxu0
    %1898 = vmatprep.mubr.f32.mxu0 0.0
    %1899 = vmatmul.mubr.f32.gmra.mrb[0].mxu0 %v1803
    %v1900 = vpop.f32.mrb[0].mxu0
    %v1901 = vadd.f32 %v1827, %v1900
    %v1902 = vpop.f32.mrb[0].mxu0
    %1903 = vdwg.mxu0
    %v1904 = vadd.f32 %v1706, %v1896
    %v1905 = vadd.f32 %v1707, %v1901
    %s1906 = scalar_lea.vmem %s20, 1
    %v1907 = vld [vmem:[%s1906] sm:$0x1]
    %s1908 = scalar_lea.vmem %s21, 1
    %v1909 = vld [vmem:[%s1908] sm:$0x1]
    %v1910 = vsel %vm208, %v1904, 0.0
    %1911 = vadd.xlane.f32.xlu0 %v1910
    %v1912 = vpop.xlane.xlu0 %1911
    %v1913 = vsel %vm208, %v1905, 0.0
    %1914 = vadd.xlane.f32.xlu0 %v1913
    %v1915 = vpop.xlane.xlu0 %1914
    %v1916 = vmul.f32 %v1912, %v795
    %v1917 = vmul.f32 %v1915, %v795
    %v1918 = vsub.f32 %v1904, %v1916
    %v1919 = vsub.f32 %v1905, %v1917
    %v1920 = vmul.f32 %v1918, %v1918
    %v1921 = vmul.f32 %v1919, %v1919
    %v1922 = vsel %vm208, %v1920, 0.0
    %1923 = vadd.xlane.f32.xlu0 %v1922
    %v1924 = vpop.xlane.xlu0 %1923
    %v1925 = vsel %vm208, %v1921, 0.0
    %1926 = vadd.xlane.f32.xlu0 %v1925
    %v1927 = vpop.xlane.xlu0 %1926
    %v1928 = vmul.f32 %v1924, %v795
    %v1929 = vmul.f32 %v1927, %v795
    %v1930 = vadd.f32 %v1928, 1e-05
    %v1931 = vadd.f32 %v1929, 1e-05
    %v1932 = vrsqrt.pop %v1930
    %v1933 = vrsqrt.pop %v1931
    %v1934 = vmul.f32 %v1918, %v1932
    %v1935 = vmul.f32 %v1919, %v1933
    %v1937 = vlaneseq
    %v1938 = vshrl.u32 %v1937, 7
    %v1939 = vsub.s32 0, %v1938
    %v1940 = vrot.slane %v1907, %v1939
    %v1942 = vmul.f32 %v1934, %v1940
    %v1943 = vmul.f32 %v1935, %v1940
    %v1945 = vlaneseq
    %v1946 = vshrl.u32 %v1945, 7
    %v1947 = vsub.s32 0, %v1946
    %v1948 = vrot.slane %v1909, %v1947
    %v1950 = vadd.f32 %v1942, %v1948
    %v1951 = vadd.f32 %v1943, %v1948
    %1952 = vst.msk [vmem:[#allocation2] sm:$0xff] %vm208, %v1950
    %1953 = vst.msk [vmem:[#allocation2 + $0x8] sm:$0xff] %vm208, %v1951
    // Predicated region
    $region90: #{vit_forward.1} parent=1 // pred_check
      _
    $region91: #{vit_forward.1} parent=1 // pred_check_branch
      %1955 = sbr.rel (0) target = $region93
    $region92: #{vit_forward.1} parent=1 // pred_region
      %s1957 = ssub.s32 256, 256
      %1958 = vsyncadd [#allocation3], %s1957
      %s1959 = sshll.u32 [#allocation2], 4
      %s1960 = int_to_ptr.vmem [resolvable:$true] %s1959
      %1965 = dma.vmem_to_hbm [thread:$0]  %s1960, 256, %s22, [#allocation3], 128, 128, 8
    $region93: #{vit_forward.1} parent=1 // pred_fallthru
      _
    // Predicated region
    $region94: #{vit_forward.1} parent=1 // pred_check
      _
    $region95: #{vit_forward.1} parent=1 // pred_check_branch
      %1967 = sbr.rel (0) target = $region97
    $region96: #{vit_forward.1} parent=1 // pred_region
      %1968 = dma.done [#allocation3], 256
    $region97: #{vit_forward.1} parent=1 // pred_fallthru
      _
    %1969 = vsyncpa [#allocation3], 1

</llo_original>
